<compile_context>
chip_gen: v7x
topology: tpu7x:2x2x1
jax: 0.10.0
libtpu: 0.0.40
codegen_flags: <defaults>
</compile_context>

<pallas_src>
import functools

import jax
import jax.numpy as jnp
from jax import lax
from jax.experimental import pallas as pl
from jax.experimental.pallas import tpu as pltpu


def _self_attn_kernel(x_ref, wq_ref, bq_ref, wk_ref, bk_ref, wv_ref, bv_ref,
                      gamma_ref, out_ref, attn_ref, q_scr, k_scr, v_scr, *, tq):
    qi = pl.program_id(1)

    # ---- per-batch projections: run once (query-tile 0), reused by all tiles ----
    @pl.when(qi == 0)
    def _():
        x = x_ref[0].astype(jnp.float32)                                        # (C, N)
        q_scr[...] = jnp.dot(wq_ref[...], x,
                             preferred_element_type=jnp.float32) + bq_ref[...]  # (C8, N)
        k_scr[...] = jnp.dot(wk_ref[...], x,
                             preferred_element_type=jnp.float32) + bk_ref[...]  # (C8, N)
        v_scr[...] = jnp.dot(wv_ref[...], x,
                             preferred_element_type=jnp.float32) + bv_ref[...]  # (C,  N)

    # ---- this query tile ----
    col = pl.multiple_of(qi * tq, tq)
    q_tile = q_scr[:, pl.ds(col, tq)]                                           # (C8, TQ)

    # energy[i, j] = sum_c q[c, i] * k[c, j]  -> contract channel axis directly
    # (no Q^T materialization, no per-step transposes).
    e = lax.dot_general(q_tile, k_scr[...],
                        dimension_numbers=(((0,), (0,)), ((), ())),
                        preferred_element_type=jnp.float32)                      # (TQ, N)

    # softmax over the key axis (exact per row-block).
    e = jnp.exp(e - jnp.max(e, axis=-1, keepdims=True))
    attn = e / jnp.sum(e, axis=-1, keepdims=True)
    attn_ref[0] = attn.astype(attn_ref.dtype)

    # out[c, i] = sum_j v[c, j] * attn[i, j]   (A @ B^T form; lane-dense TQ output)
    out_cn = lax.dot_general(v_scr[...], attn,
                             dimension_numbers=(((1,), (1,)), ((), ())),
                             preferred_element_type=jnp.float32)                 # (C, TQ)

    gamma = gamma_ref[0, 0]
    x_q = x_ref[0, :, pl.ds(col, tq)].astype(jnp.float32)                        # (C, TQ)
    out_ref[0] = (gamma * out_cn + x_q).astype(out_ref.dtype)


def self_attn_forward(x, wq, bq, wk, bk, wv, bv, gamma, *, tq=128):
    """SAGAN Self_Attn forward.

    x: (B, C, W, H); wq/wk: (C//8, C); bq/bk: (C//8,); wv: (C, C); bv: (C,);
    gamma: (1,)  -- 1x1-Conv2d parameters with the trailing 1x1 dims squeezed.
    Returns (out (B, C, W, H), attention (B, N, N)), N = W*H.
    tq: query-tile size (128 good for v5e, 256 for v6e/v7x).
    """
    B, C, W, H = x.shape
    N = W * H
    C8 = wq.shape[0]

    # Query tile must be a multiple of 128 (lane width) that divides N; otherwise
    # fall back to a single tile (block == full array, always legal).
    if tq % 128 != 0 or N % tq != 0:
        tq = N
    num_q_tiles = N // tq

    x_cn = x.reshape(B, C, N)                 # pure reshape; no transpose / HBM copy
    bq2 = bq.reshape(C8, 1).astype(jnp.float32)
    bk2 = bk.reshape(C8, 1).astype(jnp.float32)
    bv2 = bv.reshape(C, 1).astype(jnp.float32)
    gamma2 = gamma.reshape(1, 1).astype(jnp.float32)

    kernel = functools.partial(_self_attn_kernel, tq=tq)

    out_cn, attn = pl.pallas_call(
        kernel,
        out_shape=(
            jax.ShapeDtypeStruct((B, C, N), x.dtype),
            jax.ShapeDtypeStruct((B, N, N), jnp.float32),
        ),
        grid_spec=pltpu.PrefetchScalarGridSpec(
            num_scalar_prefetch=0,
            grid=(B, num_q_tiles),
            in_specs=[
                pl.BlockSpec((1, C, N), lambda b, q: (b, 0, 0)),   # x (resident per batch)
                pl.BlockSpec((C8, C), lambda b, q: (0, 0)),        # Wq
                pl.BlockSpec((C8, 1), lambda b, q: (0, 0)),        # bq
                pl.BlockSpec((C8, C), lambda b, q: (0, 0)),        # Wk
                pl.BlockSpec((C8, 1), lambda b, q: (0, 0)),        # bk
                pl.BlockSpec((C, C), lambda b, q: (0, 0)),         # Wv
                pl.BlockSpec((C, 1), lambda b, q: (0, 0)),         # bv
                pl.BlockSpec((1, 1), lambda b, q: (0, 0)),         # gamma
            ],
            out_specs=[
                pl.BlockSpec((1, C, tq), lambda b, q: (b, 0, q)),  # out, lane-dense width TQ
                pl.BlockSpec((1, tq, N), lambda b, q: (b, q, 0)),  # attention row-block
            ],
            scratch_shapes=[
                pltpu.VMEM((C8, N), jnp.float32),   # Q  (per batch)
                pltpu.VMEM((C8, N), jnp.float32),   # K  (per batch)
                pltpu.VMEM((C, N), jnp.float32),    # V  (per batch)
            ],
        ),
        compiler_params=pltpu.CompilerParams(
            # Query-tile axis is "arbitrary": Q/K/V scratch is filled at tile 0 of
            # each batch and reused by later tiles (sequential dependence). Batch
            # axis is "parallel" for megacore sharding.
            dimension_semantics=("parallel", "arbitrary"),
            vmem_limit_bytes=48 * 1024 * 1024,
        ),
    )(x_cn, wq, bq2, wk, bk2, wv, bv2, gamma2)

    out = out_cn.reshape(B, C, W, H)
    return out, attn


def _reference(x, wq, bq, wk, bk, wv, bv, gamma):
    """Pure-JAX reference mirroring the PyTorch forward (sanity check)."""
    B, C, W, H = x.shape
    N = W * H
    xf = x.reshape(B, C, N)                                         # (B, C, N)
    q = jnp.einsum('oc,bcn->bon', wq, xf) + bq[None, :, None]       # (B, C8, N)
    k = jnp.einsum('oc,bcn->bon', wk, xf) + bk[None, :, None]       # (B, C8, N)
    v = jnp.einsum('oc,bcn->bon', wv, xf) + bv[None, :, None]       # (B, C, N)
    energy = jnp.einsum('bci,bcj->bij', q, k)                       # (B, N, N)
    attn = jax.nn.softmax(energy, axis=-1)
    out = jnp.einsum('bcj,bij->bci', v, attn)                       # (B, C, N)
    out = out.reshape(B, C, W, H)
    out = gamma * out + x
    return out, attn


if __name__ == "__main__":
    key = jax.random.PRNGKey(0)
    B, C, W, H = 2, 32, 16, 16       # in_dim = 32 -> query/key channels = 4
    C8 = C // 8
    N = W * H

    k_x, k_wq, k_bq, k_wk, k_bk, k_wv, k_bv = jax.random.split(key, 7)
    x = jax.random.normal(k_x, (B, C, W, H), dtype=jnp.float32)

    # "Conv2d(kernel_size=1)" parameters, weight shape (Cout, Cin).
    wq = 0.1 * jax.random.normal(k_wq, (C8, C), dtype=jnp.float32)
    bq = 0.1 * jax.random.normal(k_bq, (C8,), dtype=jnp.float32)
    wk = 0.1 * jax.random.normal(k_wk, (C8, C), dtype=jnp.float32)
    bk = 0.1 * jax.random.normal(k_bk, (C8,), dtype=jnp.float32)
    wv = 0.1 * jax.random.normal(k_wv, (C, C), dtype=jnp.float32)
    bv = 0.1 * jax.random.normal(k_bv, (C,), dtype=jnp.float32)
    # gamma is initialized to 0 in the PyTorch module; use a nonzero value here so
    # the attention-output path of the kernel is actually exercised by the check.
    gamma = jnp.full((1,), 0.5, dtype=jnp.float32)

    out, attn = self_attn_forward(x, wq, bq, wk, bk, wv, bv, gamma)
    out = jax.block_until_ready(out)
    attn = jax.block_until_ready(attn)

    # Sanity-check against the pure-JAX reference.
    ref_out, ref_attn = _reference(x, wq, bq, wk, bk, wv, bv, gamma)
    assert out.shape == (B, C, W, H) and attn.shape == (B, N, N)
    assert jnp.allclose(attn, ref_attn, atol=1e-4, rtol=1e-4)
    assert jnp.allclose(out, ref_out, atol=1e-4, rtol=1e-4)

    print("KERNEL_OK")
</pallas_src>

<mosaic_0001>
module attributes {stable_mosaic.version = 11 : i64} {
  func.func @_self_attn_kernel(%arg0: i32, %arg1: i32, %arg2: memref<1x32x256xf32, #tpu.memory_space<vmem>>, %arg3: memref<4x32xf32, #tpu.memory_space<vmem>>, %arg4: memref<4x1xf32, #tpu.memory_space<vmem>>, %arg5: memref<4x32xf32, #tpu.memory_space<vmem>>, %arg6: memref<4x1xf32, #tpu.memory_space<vmem>>, %arg7: memref<32x32xf32, #tpu.memory_space<vmem>>, %arg8: memref<32x1xf32, #tpu.memory_space<vmem>>, %arg9: memref<1x1xf32, #tpu.memory_space<vmem>>, %arg10: memref<1x32x128xf32, #tpu.memory_space<vmem>>, %arg11: memref<1x128x256xf32, #tpu.memory_space<vmem>>, %arg12: memref<4x256xf32, #tpu.memory_space<vmem>>, %arg13: memref<4x256xf32, #tpu.memory_space<vmem>>, %arg14: memref<32x256xf32, #tpu.memory_space<vmem>>) attributes {dimension_semantics = [#tpu.dimension_semantics<parallel>, #tpu.dimension_semantics<arbitrary>], iteration_bounds = array<i64: 2, 2>, scalar_prefetch = 0 : i64, scratch_operands = 3 : i64, tpu.core_type = #tpu.core_type<tc>, window_params = [{transform_indices = @transform_0, window_bounds = array<i64: 1, 32, 256>}, {pipeline_mode = #tpu.pipeline_mode<synchronous>, transform_indices = @transform_1, window_bounds = array<i64: 4, 32>}, {pipeline_mode = #tpu.pipeline_mode<synchronous>, transform_indices = @transform_2, window_bounds = array<i64: 4, 1>}, {pipeline_mode = #tpu.pipeline_mode<synchronous>, transform_indices = @transform_3, window_bounds = array<i64: 4, 32>}, {pipeline_mode = #tpu.pipeline_mode<synchronous>, transform_indices = @transform_4, window_bounds = array<i64: 4, 1>}, {pipeline_mode = #tpu.pipeline_mode<synchronous>, transform_indices = @transform_5, window_bounds = array<i64: 32, 32>}, {pipeline_mode = #tpu.pipeline_mode<synchronous>, transform_indices = @transform_6, window_bounds = array<i64: 32, 1>}, {pipeline_mode = #tpu.pipeline_mode<synchronous>, transform_indices = @transform_7, window_bounds = array<i64: 1, 1>}, {transform_indices = @transform_8, window_bounds = array<i64: 1, 32, 128>}, {transform_indices = @transform_9, window_bounds = array<i64: 1, 128, 256>}]} {
    %c0_i32 = arith.constant 0 : i32
    %0 = arith.cmpi eq, %arg1, %c0_i32 : i32
    %1 = arith.extui %0 : i1 to i32
    %c0_i32_0 = arith.constant 0 : i32
    %2 = arith.cmpi ne, %1, %c0_i32_0 : i32
    scf.if %2 {
      %c0_18 = arith.constant 0 : index
      %c0_19 = arith.constant 0 : index
      %c0_20 = arith.constant 0 : index
      %34 = vector.load %arg2[%c0_18, %c0_19, %c0_20] : memref<1x32x256xf32, #tpu.memory_space<vmem>>, vector<1x32x256xf32>
      %35 = vector.shape_cast %34 : vector<1x32x256xf32> to vector<32x256xf32>
      %c0_21 = arith.constant 0 : index
      %c0_22 = arith.constant 0 : index
      %36 = vector.load %arg3[%c0_21, %c0_22] : memref<4x32xf32, #tpu.memory_space<vmem>>, vector<4x32xf32>
      %cst_23 = arith.constant dense<0.000000e+00> : vector<4x256xf32>
      %37 = tpu.matmul %36, %35, %cst_23 {dimension_numbers = #tpu.dot_dimension_numbers<[1], [0], [0], [1], [0, 0, 1, 1], [], []>} : vector<4x32xf32>, vector<32x256xf32>, vector<4x256xf32> -> vector<4x256xf32>
      %c0_24 = arith.constant 0 : index
      %c0_25 = arith.constant 0 : index
      %38 = vector.load %arg4[%c0_24, %c0_25] : memref<4x1xf32, #tpu.memory_space<vmem>>, vector<4x1xf32>
      %39 = vector.broadcast %38 : vector<4x1xf32> to vector<4x256xf32>
      %40 = arith.addf %37, %39 : vector<4x256xf32>
      %c0_26 = arith.constant 0 : index
      %c0_27 = arith.constant 0 : index
      %41 = vector.load %arg12[%c0_26, %c0_27] : memref<4x256xf32, #tpu.memory_space<vmem>>, vector<4x256xf32>
      tpu.vector_store %arg12[%c0_26, %c0_27], %40 {strides = array<i32>} : memref<4x256xf32, #tpu.memory_space<vmem>>, vector<4x256xf32>,
      %c0_28 = arith.constant 0 : index
      %c0_29 = arith.constant 0 : index
      %42 = vector.load %arg5[%c0_28, %c0_29] : memref<4x32xf32, #tpu.memory_space<vmem>>, vector<4x32xf32>
      %cst_30 = arith.constant dense<0.000000e+00> : vector<4x256xf32>
      %43 = tpu.matmul %42, %35, %cst_30 {dimension_numbers = #tpu.dot_dimension_numbers<[1], [0], [0], [1], [0, 0, 1, 1], [], []>} : vector<4x32xf32>, vector<32x256xf32>, vector<4x256xf32> -> vector<4x256xf32>
      %c0_31 = arith.constant 0 : index
      %c0_32 = arith.constant 0 : index
      %44 = vector.load %arg6[%c0_31, %c0_32] : memref<4x1xf32, #tpu.memory_space<vmem>>, vector<4x1xf32>
      %45 = vector.broadcast %44 : vector<4x1xf32> to vector<4x256xf32>
      %46 = arith.addf %43, %45 : vector<4x256xf32>
      %c0_33 = arith.constant 0 : index
      %c0_34 = arith.constant 0 : index
      %47 = vector.load %arg13[%c0_33, %c0_34] : memref<4x256xf32, #tpu.memory_space<vmem>>, vector<4x256xf32>
      tpu.vector_store %arg13[%c0_33, %c0_34], %46 {strides = array<i32>} : memref<4x256xf32, #tpu.memory_space<vmem>>, vector<4x256xf32>,
      %c0_35 = arith.constant 0 : index
      %c0_36 = arith.constant 0 : index
      %48 = vector.load %arg7[%c0_35, %c0_36] : memref<32x32xf32, #tpu.memory_space<vmem>>, vector<32x32xf32>
      %cst_37 = arith.constant dense<0.000000e+00> : vector<32x256xf32>
      %49 = tpu.matmul %48, %35, %cst_37 {dimension_numbers = #tpu.dot_dimension_numbers<[1], [0], [0], [1], [0, 0, 1, 1], [], []>} : vector<32x32xf32>, vector<32x256xf32>, vector<32x256xf32> -> vector<32x256xf32>
      %c0_38 = arith.constant 0 : index
      %c0_39 = arith.constant 0 : index
      %50 = vector.load %arg8[%c0_38, %c0_39] : memref<32x1xf32, #tpu.memory_space<vmem>>, vector<32x1xf32>
      %51 = vector.broadcast %50 : vector<32x1xf32> to vector<32x256xf32>
      %52 = arith.addf %49, %51 : vector<32x256xf32>
      %c0_40 = arith.constant 0 : index
      %c0_41 = arith.constant 0 : index
      %53 = vector.load %arg14[%c0_40, %c0_41] : memref<32x256xf32, #tpu.memory_space<vmem>>, vector<32x256xf32>
      tpu.vector_store %arg14[%c0_40, %c0_41], %52 {strides = array<i32>} : memref<32x256xf32, #tpu.memory_space<vmem>>, vector<32x256xf32>,
    } else {
    }
    %c128_i32 = arith.constant 128 : i32
    %3 = arith.muli %arg1, %c128_i32 : i32
    %4 = tpu.assume_multiple %3, 128 : i32
    %c0 = arith.constant 0 : index
    %5 = arith.index_cast %4 : i32 to index
    %6 = vector.load %arg12[%c0, %5] : memref<4x256xf32, #tpu.memory_space<vmem>>, vector<4x128xf32>
    %c0_1 = arith.constant 0 : index
    %c0_2 = arith.constant 0 : index
    %7 = vector.load %arg13[%c0_1, %c0_2] : memref<4x256xf32, #tpu.memory_space<vmem>>, vector<4x256xf32>
    %cst = arith.constant dense<0.000000e+00> : vector<128x256xf32>
    %8 = tpu.matmul %6, %7, %cst {dimension_numbers = #tpu.dot_dimension_numbers<[0], [0], [1], [1], [0, 1, 1, 1], [], []>} : vector<4x128xf32>, vector<4x256xf32>, vector<128x256xf32> -> vector<128x256xf32>
    %cst_3 = arith.constant dense<0xFF800000> : vector<128xf32>
    %9 = vector.multi_reduction <maximumf>, %8, %cst_3 [1] : vector<128x256xf32> to vector<128xf32>
    %10 = vector.shape_cast %9 : vector<128xf32> to vector<128x1xf32>
    %11 = vector.broadcast %10 : vector<128x1xf32> to vector<128x256xf32>
    %12 = arith.subf %8, %11 : vector<128x256xf32>
    %13 = math.exp %12 : vector<128x256xf32>
    %cst_4 = arith.constant dense<0.000000e+00> : vector<128xf32>
    %14 = vector.multi_reduction <add>, %13, %cst_4 [1] : vector<128x256xf32> to vector<128xf32>
    %15 = vector.shape_cast %14 : vector<128xf32> to vector<128x1xf32>
    %16 = vector.broadcast %15 : vector<128x1xf32> to vector<128x256xf32>
    %17 = arith.divf %13, %16 : vector<128x256xf32>
    %c0_5 = arith.constant 0 : index
    %c0_6 = arith.constant 0 : index
    %c0_7 = arith.constant 0 : index
    %18 = vector.load %arg11[%c0_5, %c0_6, %c0_7] : memref<1x128x256xf32, #tpu.memory_space<vmem>>, vector<1x128x256xf32>
    %19 = vector.shape_cast %18 : vector<1x128x256xf32> to vector<128x256xf32>
    %20 = vector.shape_cast %17 : vector<128x256xf32> to vector<1x128x256xf32>
    tpu.vector_store %arg11[%c0_5, %c0_6, %c0_7], %20 {strides = array<i32>} : memref<1x128x256xf32, #tpu.memory_space<vmem>>, vector<1x128x256xf32>,
    %c0_8 = arith.constant 0 : index
    %c0_9 = arith.constant 0 : index
    %21 = vector.load %arg14[%c0_8, %c0_9] : memref<32x256xf32, #tpu.memory_space<vmem>>, vector<32x256xf32>
    %cst_10 = arith.constant dense<0.000000e+00> : vector<32x128xf32>
    %22 = tpu.matmul %21, %17, %cst_10 {dimension_numbers = #tpu.dot_dimension_numbers<[1], [1], [0], [0], [0, 0, 1, 0], [], []>} : vector<32x256xf32>, vector<128x256xf32>, vector<32x128xf32> -> vector<32x128xf32>
    %c0_11 = arith.constant 0 : index
    %c0_12 = arith.constant 0 : index
    %23 = vector.load %arg9[%c0_11, %c0_12] : memref<1x1xf32, #tpu.memory_space<vmem>>, vector<1x1xf32>
    %24 = vector.extract %23[0, 0] : f32 from vector<1x1xf32>
    %c0_13 = arith.constant 0 : index
    %c0_14 = arith.constant 0 : index
    %25 = arith.index_cast %4 : i32 to index
    %26 = vector.load %arg2[%c0_13, %c0_14, %25] : memref<1x32x256xf32, #tpu.memory_space<vmem>>, vector<1x32x128xf32>
    %27 = vector.shape_cast %26 : vector<1x32x128xf32> to vector<32x128xf32>
    %28 = vector.broadcast %24 : f32 to vector<32x128xf32>
    %29 = arith.mulf %28, %22 : vector<32x128xf32>
    %30 = arith.addf %29, %27 : vector<32x128xf32>
    %c0_15 = arith.constant 0 : index
    %c0_16 = arith.constant 0 : index
    %c0_17 = arith.constant 0 : index
    %31 = vector.load %arg10[%c0_15, %c0_16, %c0_17] : memref<1x32x128xf32, #tpu.memory_space<vmem>>, vector<1x32x128xf32>
    %32 = vector.shape_cast %31 : vector<1x32x128xf32> to vector<32x128xf32>
    %33 = vector.shape_cast %30 : vector<32x128xf32> to vector<1x32x128xf32>
    tpu.vector_store %arg10[%c0_15, %c0_16, %c0_17], %33 {strides = array<i32>} : memref<1x32x128xf32, #tpu.memory_space<vmem>>, vector<1x32x128xf32>,
    return
  }
  func.func @transform_0(%arg0: i32, %arg1: i32) -> (i32, i32, i32) {
    %c0_i32 = arith.constant 0 : i32
    %c0_i32_0 = arith.constant 0 : i32
    %c0_i32_1 = arith.constant 0 : i32
    return %arg0, %c0_i32, %c0_i32_0 : i32, i32, i32
  }
  func.func @transform_1(%arg0: i32, %arg1: i32) -> (i32, i32) {
    %c0_i32 = arith.constant 0 : i32
    %c0_i32_0 = arith.constant 0 : i32
    %c0_i32_1 = arith.constant 0 : i32
    return %c0_i32, %c0_i32_0 : i32, i32
  }
  func.func @transform_2(%arg0: i32, %arg1: i32) -> (i32, i32) {
    %c0_i32 = arith.constant 0 : i32
    %c0_i32_0 = arith.constant 0 : i32
    %c0_i32_1 = arith.constant 0 : i32
    return %c0_i32, %c0_i32_0 : i32, i32
  }
  func.func @transform_3(%arg0: i32, %arg1: i32) -> (i32, i32) {
    %c0_i32 = arith.constant 0 : i32
    %c0_i32_0 = arith.constant 0 : i32
    %c0_i32_1 = arith.constant 0 : i32
    return %c0_i32, %c0_i32_0 : i32, i32
  }
  func.func @transform_4(%arg0: i32, %arg1: i32) -> (i32, i32) {
    %c0_i32 = arith.constant 0 : i32
    %c0_i32_0 = arith.constant 0 : i32
    %c0_i32_1 = arith.constant 0 : i32
    return %c0_i32, %c0_i32_0 : i32, i32
  }
  func.func @transform_5(%arg0: i32, %arg1: i32) -> (i32, i32) {
    %c0_i32 = arith.constant 0 : i32
    %c0_i32_0 = arith.constant 0 : i32
    %c0_i32_1 = arith.constant 0 : i32
    return %c0_i32, %c0_i32_0 : i32, i32
  }
  func.func @transform_6(%arg0: i32, %arg1: i32) -> (i32, i32) {
    %c0_i32 = arith.constant 0 : i32
    %c0_i32_0 = arith.constant 0 : i32
    %c0_i32_1 = arith.constant 0 : i32
    return %c0_i32, %c0_i32_0 : i32, i32
  }
  func.func @transform_7(%arg0: i32, %arg1: i32) -> (i32, i32) {
    %c0_i32 = arith.constant 0 : i32
    %c0_i32_0 = arith.constant 0 : i32
    %c0_i32_1 = arith.constant 0 : i32
    return %c0_i32, %c0_i32_0 : i32, i32
  }
  func.func @transform_8(%arg0: i32, %arg1: i32) -> (i32, i32, i32) {
    %c0_i32 = arith.constant 0 : i32
    %c0_i32_0 = arith.constant 0 : i32
    return %arg0, %c0_i32, %arg1 : i32, i32, i32
  }
  func.func @transform_9(%arg0: i32, %arg1: i32) -> (i32, i32, i32) {
    %c0_i32 = arith.constant 0 : i32
    %c0_i32_0 = arith.constant 0 : i32
    return %arg0, %arg1, %c0_i32 : i32, i32, i32
  }
}

</mosaic_0001>

<llo_original>
// kernel: tpu_custom_call.1
$region0: #{tpu_custom_call.1}
  #allocation0 [shape = 'u32[]', space=smem, size = 0x4, offset = 0x4, fixed_abs, tag = 'smem constant byte address 0x4 - core index']
  #allocation1 [shape = 'u32[144,128]{1,0:T(1,128)}', space=vmem, size = 0x12000, scoped, tag = 'internal scratch']
  #allocation2 [shape = 'f32[4,256]{1,0:T(4,128)}', space=vmem, size = 0x1000, scoped, tag = 'scratch operand']
  #allocation3 [shape = 'f32[4,256]{1,0:T(4,128)}', space=vmem, size = 0x1000, scoped, tag = 'scratch operand']
  #allocation4 [shape = 'f32[32,256]{1,0:T(8,128)}', space=vmem, size = 0x8000, scoped, tag = 'scratch operand']
  #allocation5 [shape = 'f32[1,1]{1,0:T(1,128)S(1)}', space=vmem, size = 0x200, scoped, tag = 'scoped memory for tpu_custom_call.1']
  %s0 = inlined_call_operand.hbm [shape: f32[2,32,256], index: 0, kind: input, shape index: {}]
  %s1 = inlined_call_operand.vmem [shape: f32[4,32], index: 1, kind: input, shape index: {}]
  %s2 = inlined_call_operand.vmem [shape: f32[4,1], index: 2, kind: input, shape index: {}]
  %s3 = inlined_call_operand.vmem [shape: f32[4,32], index: 3, kind: input, shape index: {}]
  %s4 = inlined_call_operand.vmem [shape: f32[4,1], index: 4, kind: input, shape index: {}]
  %s5 = inlined_call_operand.vmem [shape: f32[32,32], index: 5, kind: input, shape index: {}]
  %s6 = inlined_call_operand.vmem [shape: f32[32,1], index: 6, kind: input, shape index: {}]
  %s7 = inlined_call_operand.<no memory space> [shape: f32[1,1], index: 7, kind: input, shape index: {}]
  %s8 = inlined_call_operand.hbm [shape: f32[2,32,256], index: 8, kind: output, shape index: {0}]
  %s9 = inlined_call_operand.hbm [shape: f32[2,256,256], index: 9, kind: output, shape index: {1}]
  %10 = xla_tuple %s8, %s9
  %s11 = sld [smem:[#allocation0]]
  $region81: #{tpu_custom_call.1} parent=0
    _
  %s13 = ssub.s32 1, %s11
  %s14 = scalar_select 0, %s13, %s11
  %v15 = vstv %s7
  %16 = vst [vmem:[#allocation5] sm:$0x1] %v15
  $region1: #{tpu_custom_call.1} parent=0
    #allocation6 [shape = 'u8[65536]{0}', space=vmem, size = 0x10000, scoped, tag = 'input window, operand 0']
    #allocation7 [shape = 's32[2]{0}', space=sflag, size = 0x8, scoped, tag = 'scoped memory for tpu_custom_call.1']
    #allocation8 [shape = 's32[2]{0}', space=sflag, size = 0x8, scoped, tag = 'scoped memory for tpu_custom_call.1']
    #allocation9 [shape = 'u8[32768]{0}', space=vmem, size = 0x8000, scoped, tag = 'output window, operand 0']
    #allocation10 [shape = 'u8[262144]{0}', space=vmem, size = 0x40000, scoped, tag = 'output window, operand 1']
    #allocation11 [shape = 's32[2]{0}', space=sflag, size = 0x8, scoped, tag = 'scoped memory for tpu_custom_call.1']
    %17 = vsyncpa [#allocation7], 0
    %s18 = scalar_lea.sflag [#allocation7], 1
    %19 = vsyncpa %s18, 0
    %20 = vsyncpa [#allocation8], 0
    %s21 = scalar_lea.sflag [#allocation8], 1
    %22 = vsyncpa %s21, 0
    %23 = vsyncpa [#allocation11], 0
    %s24 = scalar_lea.sflag [#allocation11], 1
    %25 = vsyncpa %s24, 0
    loop: start=0, step=1, limit=6
    $region2: #{tpu_custom_call.1} parent=1 // loop_pre_header
      _
    $region3: #{tpu_custom_call.1} parent=1 // loop_header
      %s27 = sphi 0, %s31
      %p28 = scmp.ge.s32.totalorder %s27, 6
      %s34 = sphi 0, %s46
      %s35 = sphi 0, %s42
      %s36 = sphi 0, %s34
      %s37 = sphi 0, %s35
      %s38 = sphi 0, %s36
      %s39 = sphi 0, %s37
      %s49 = sphi 0, %s51
      %s52 = sphi 0, %s49
      %s53 = sphi 0, %s52
      %s69 = sphi 0, %s53
      %s73 = sphi 0, %s73
      %s75 = sphi 0, %s73
      %s76 = sphi 0, %s75
      %s90 = sphi 0, %s76
      %s94 = sphi 0, %s94
      %s96 = sphi 0, %s94
      %s97 = sphi 0, %s96
      %s111 = sphi 0, %s97
      %s115 = sphi 0, %s115
      %s117 = sphi 0, %s115
      %s118 = sphi 0, %s117
      %s132 = sphi 0, %s118
      %s136 = sphi 0, %s136
      %s138 = sphi 0, %s136
      %s139 = sphi 0, %s138
      %s153 = sphi 0, %s139
      %s157 = sphi 0, %s157
      %s159 = sphi 0, %s157
      %s160 = sphi 0, %s159
      %s174 = sphi 0, %s160
      %s178 = sphi 0, %s178
      %s180 = sphi 0, %s178
      %s181 = sphi 0, %s180
      %s195 = sphi 0, %s181
      %s199 = sphi 0, %s199
      %s201 = sphi 0, %s199
      %s202 = sphi 0, %s201
      %s216 = sphi 0, %s202
      %s224 = sphi 0, %s226
      %s227 = sphi 0, %s224
      %s228 = sphi 0, %s227
      %s244 = sphi 0, %s228
      %s252 = sphi 0, %s254
      %s255 = sphi 0, %s252
      %s256 = sphi 0, %s255
      %s272 = sphi 0, %s256
    $region4: #{tpu_custom_call.1} parent=1 // loop_header_branch
      %30 = sbr.rel (%p28) target = $region8
    $region5: #{tpu_custom_call.1} parent=1 // loop_body
      %s32 = ssub.s32 %s27, 1
      %s33 = ssub.s32 %s27, 2
      %s40 = sadd.s32 1, %s35
      %p41 = scmp.ge.s32.totalorder %s40, 2
      %s42 = scalar_select %p41, 0, %s40
      %s43 = sadd.s32 1, %s34
      %s44 = scalar_select %p41, %s43, %s34
      %p45 = scmp.ge.s32.totalorder %s44, 2
      %s46 = scalar_select %p45, 0, %s44
      %s47 = ssub.s32 %s34, %s46
      %p48 = scmp.eq.s32.totalorder %s47, 0
      %s50 = sadd.s32 %s49, 1
      %s51 = scalar_select %p48, %s49, %s50
      %p54 = pneg %p48
      %p55 = scmp.eq.s32.totalorder %s27, 3
      %p56 = por %p54, %p55
      %p57 = scmp.ne.s32.totalorder %s49, %s52
      %p58 = scmp.eq.s32.totalorder %s27, 0
      %p59 = por %p57, %p58
      %p60 = scmp.ne.s32.totalorder %s49, %s52
      %p61 = scmp.eq.s32.totalorder %s32, 3
      %p62 = por %p60, %p61
      %p63 = scmp.ne.s32.totalorder %s52, %s53
      %p64 = scmp.eq.s32.totalorder %s32, 0
      %p65 = por %p63, %p64
      %p66 = scmp.ne.s32.totalorder %s52, %s53
      %p67 = scmp.eq.s32.totalorder %s33, 3
      %p68 = por %p66, %p67
      %p70 = scmp.ne.s32.totalorder %s53, %s69
      %p71 = scmp.eq.s32.totalorder %s33, 0
      %p72 = por %p70, %p71
      %s74 = sadd.s32 %s73, 1
      %p77 = scmp.eq.s32.totalorder %s27, 3
      %p78 = scmp.ne.s32.totalorder %s73, %s75
      %p79 = scmp.eq.s32.totalorder %s27, 0
      %p80 = por %p78, %p79
      %p81 = scmp.ne.s32.totalorder %s73, %s75
      %p82 = scmp.eq.s32.totalorder %s32, 3
      %p83 = por %p81, %p82
      %p84 = scmp.ne.s32.totalorder %s75, %s76
      %p85 = scmp.eq.s32.totalorder %s32, 0
      %p86 = por %p84, %p85
      %p87 = scmp.ne.s32.totalorder %s75, %s76
      %p88 = scmp.eq.s32.totalorder %s33, 3
      %p89 = por %p87, %p88
      %p91 = scmp.ne.s32.totalorder %s76, %s90
      %p92 = scmp.eq.s32.totalorder %s33, 0
      %p93 = por %p91, %p92
      %s95 = sadd.s32 %s94, 1
      %p98 = scmp.eq.s32.totalorder %s27, 3
      %p99 = scmp.ne.s32.totalorder %s94, %s96
      %p100 = scmp.eq.s32.totalorder %s27, 0
      %p101 = por %p99, %p100
      %p102 = scmp.ne.s32.totalorder %s94, %s96
      %p103 = scmp.eq.s32.totalorder %s32, 3
      %p104 = por %p102, %p103
      %p105 = scmp.ne.s32.totalorder %s96, %s97
      %p106 = scmp.eq.s32.totalorder %s32, 0
      %p107 = por %p105, %p106
      %p108 = scmp.ne.s32.totalorder %s96, %s97
      %p109 = scmp.eq.s32.totalorder %s33, 3
      %p110 = por %p108, %p109
      %p112 = scmp.ne.s32.totalorder %s97, %s111
      %p113 = scmp.eq.s32.totalorder %s33, 0
      %p114 = por %p112, %p113
      %s116 = sadd.s32 %s115, 1
      %p119 = scmp.eq.s32.totalorder %s27, 3
      %p120 = scmp.ne.s32.totalorder %s115, %s117
      %p121 = scmp.eq.s32.totalorder %s27, 0
      %p122 = por %p120, %p121
      %p123 = scmp.ne.s32.totalorder %s115, %s117
      %p124 = scmp.eq.s32.totalorder %s32, 3
      %p125 = por %p123, %p124
      %p126 = scmp.ne.s32.totalorder %s117, %s118
      %p127 = scmp.eq.s32.totalorder %s32, 0
      %p128 = por %p126, %p127
      %p129 = scmp.ne.s32.totalorder %s117, %s118
      %p130 = scmp.eq.s32.totalorder %s33, 3
      %p131 = por %p129, %p130
      %p133 = scmp.ne.s32.totalorder %s118, %s132
      %p134 = scmp.eq.s32.totalorder %s33, 0
      %p135 = por %p133, %p134
      %s137 = sadd.s32 %s136, 1
      %p140 = scmp.eq.s32.totalorder %s27, 3
      %p141 = scmp.ne.s32.totalorder %s136, %s138
      %p142 = scmp.eq.s32.totalorder %s27, 0
      %p143 = por %p141, %p142
      %p144 = scmp.ne.s32.totalorder %s136, %s138
      %p145 = scmp.eq.s32.totalorder %s32, 3
      %p146 = por %p144, %p145
      %p147 = scmp.ne.s32.totalorder %s138, %s139
      %p148 = scmp.eq.s32.totalorder %s32, 0
      %p149 = por %p147, %p148
      %p150 = scmp.ne.s32.totalorder %s138, %s139
      %p151 = scmp.eq.s32.totalorder %s33, 3
      %p152 = por %p150, %p151
      %p154 = scmp.ne.s32.totalorder %s139, %s153
      %p155 = scmp.eq.s32.totalorder %s33, 0
      %p156 = por %p154, %p155
      %s158 = sadd.s32 %s157, 1
      %p161 = scmp.eq.s32.totalorder %s27, 3
      %p162 = scmp.ne.s32.totalorder %s157, %s159
      %p163 = scmp.eq.s32.totalorder %s27, 0
      %p164 = por %p162, %p163
      %p165 = scmp.ne.s32.totalorder %s157, %s159
      %p166 = scmp.eq.s32.totalorder %s32, 3
      %p167 = por %p165, %p166
      %p168 = scmp.ne.s32.totalorder %s159, %s160
      %p169 = scmp.eq.s32.totalorder %s32, 0
      %p170 = por %p168, %p169
      %p171 = scmp.ne.s32.totalorder %s159, %s160
      %p172 = scmp.eq.s32.totalorder %s33, 3
      %p173 = por %p171, %p172
      %p175 = scmp.ne.s32.totalorder %s160, %s174
      %p176 = scmp.eq.s32.totalorder %s33, 0
      %p177 = por %p175, %p176
      %s179 = sadd.s32 %s178, 1
      %p182 = scmp.eq.s32.totalorder %s27, 3
      %p183 = scmp.ne.s32.totalorder %s178, %s180
      %p184 = scmp.eq.s32.totalorder %s27, 0
      %p185 = por %p183, %p184
      %p186 = scmp.ne.s32.totalorder %s178, %s180
      %p187 = scmp.eq.s32.totalorder %s32, 3
      %p188 = por %p186, %p187
      %p189 = scmp.ne.s32.totalorder %s180, %s181
      %p190 = scmp.eq.s32.totalorder %s32, 0
      %p191 = por %p189, %p190
      %p192 = scmp.ne.s32.totalorder %s180, %s181
      %p193 = scmp.eq.s32.totalorder %s33, 3
      %p194 = por %p192, %p193
      %p196 = scmp.ne.s32.totalorder %s181, %s195
      %p197 = scmp.eq.s32.totalorder %s33, 0
      %p198 = por %p196, %p197
      %s200 = sadd.s32 %s199, 1
      %p203 = scmp.eq.s32.totalorder %s27, 3
      %p204 = scmp.ne.s32.totalorder %s199, %s201
      %p205 = scmp.eq.s32.totalorder %s27, 0
      %p206 = por %p204, %p205
      %p207 = scmp.ne.s32.totalorder %s199, %s201
      %p208 = scmp.eq.s32.totalorder %s32, 3
      %p209 = por %p207, %p208
      %p210 = scmp.ne.s32.totalorder %s201, %s202
      %p211 = scmp.eq.s32.totalorder %s32, 0
      %p212 = por %p210, %p211
      %p213 = scmp.ne.s32.totalorder %s201, %s202
      %p214 = scmp.eq.s32.totalorder %s33, 3
      %p215 = por %p213, %p214
      %p217 = scmp.ne.s32.totalorder %s202, %s216
      %p218 = scmp.eq.s32.totalorder %s33, 0
      %p219 = por %p217, %p218
      %s220 = ssub.s32 %s34, %s46
      %s221 = ssub.s32 %s35, %s42
      %s222 = sor.u32 %s220, %s221
      %p223 = scmp.eq.s32.totalorder %s222, 0
      %s225 = sadd.s32 %s224, 1
      %s226 = scalar_select %p223, %s224, %s225
      %p229 = pneg %p223
      %p230 = scmp.eq.s32.totalorder %s27, 3
      %p231 = por %p229, %p230
      %p232 = scmp.ne.s32.totalorder %s224, %s227
      %p233 = scmp.eq.s32.totalorder %s27, 0
      %p234 = por %p232, %p233
      %p235 = scmp.ne.s32.totalorder %s224, %s227
      %p236 = scmp.eq.s32.totalorder %s32, 3
      %p237 = por %p235, %p236
      %p238 = scmp.ne.s32.totalorder %s227, %s228
      %p239 = scmp.eq.s32.totalorder %s32, 0
      %p240 = por %p238, %p239
      %p241 = scmp.ne.s32.totalorder %s227, %s228
      %p242 = scmp.eq.s32.totalorder %s33, 3
      %p243 = por %p241, %p242
      %p245 = scmp.ne.s32.totalorder %s228, %s244
      %p246 = scmp.eq.s32.totalorder %s33, 0
      %p247 = por %p245, %p246
      %s248 = ssub.s32 %s34, %s46
      %s249 = ssub.s32 %s35, %s42
      %s250 = sor.u32 %s248, %s249
      %p251 = scmp.eq.s32.totalorder %s250, 0
      %s253 = sadd.s32 %s252, 1
      %s254 = scalar_select %p251, %s252, %s253
      %p257 = pneg %p251
      %p258 = scmp.eq.s32.totalorder %s27, 3
      %p259 = por %p257, %p258
      %p260 = scmp.ne.s32.totalorder %s252, %s255
      %p261 = scmp.eq.s32.totalorder %s27, 0
      %p262 = por %p260, %p261
      %p263 = scmp.ne.s32.totalorder %s252, %s255
      %p264 = scmp.eq.s32.totalorder %s32, 3
      %p265 = por %p263, %p264
      %p266 = scmp.ne.s32.totalorder %s255, %s256
      %p267 = scmp.eq.s32.totalorder %s32, 0
      %p268 = por %p266, %p267
      %p269 = scmp.ne.s32.totalorder %s255, %s256
      %p270 = scmp.eq.s32.totalorder %s33, 3
      %p271 = por %p269, %p270
      %p273 = scmp.ne.s32.totalorder %s256, %s272
      %p274 = scmp.eq.s32.totalorder %s33, 0
      %p275 = por %p273, %p274
      %p276 = scmp.le.s32.totalorder 1, %s27
      %p277 = scmp.lt.s32.totalorder %s27, 5
      %p278 = pnand %p276, %p277
      %p279 = pneg %p278
      // Predicated region
      $region9: #{tpu_custom_call.1} parent=5 // pred_check
        _
      $region10: #{tpu_custom_call.1} parent=5 // pred_check_branch
        %281 = sbr.rel (%p278) target = $region12
      $region11: #{tpu_custom_call.1} parent=5 // pred_region
        %s282 = ssub.s32 %s27, 1
        // Predicated region
        $region13: #{tpu_custom_call.1} parent=11 // pred_check
          %p283 = pneg %p86
        $region14: #{tpu_custom_call.1} parent=11 // pred_check_branch
          %285 = sbr.rel (%p283) target = $region16
        $region15: #{tpu_custom_call.1} parent=11 // pred_region
          _
        $region16: #{tpu_custom_call.1} parent=11 // pred_fallthru
          _
        // Predicated region
        $region17: #{tpu_custom_call.1} parent=11 // pred_check
          %p286 = pneg %p107
        $region18: #{tpu_custom_call.1} parent=11 // pred_check_branch
          %288 = sbr.rel (%p286) target = $region20
        $region19: #{tpu_custom_call.1} parent=11 // pred_region
          _
        $region20: #{tpu_custom_call.1} parent=11 // pred_fallthru
          _
        // Predicated region
        $region21: #{tpu_custom_call.1} parent=11 // pred_check
          %p289 = pneg %p128
        $region22: #{tpu_custom_call.1} parent=11 // pred_check_branch
          %291 = sbr.rel (%p289) target = $region24
        $region23: #{tpu_custom_call.1} parent=11 // pred_region
          _
        $region24: #{tpu_custom_call.1} parent=11 // pred_fallthru
          _
        // Predicated region
        $region25: #{tpu_custom_call.1} parent=11 // pred_check
          %p292 = pneg %p149
        $region26: #{tpu_custom_call.1} parent=11 // pred_check_branch
          %294 = sbr.rel (%p292) target = $region28
        $region27: #{tpu_custom_call.1} parent=11 // pred_region
          _
        $region28: #{tpu_custom_call.1} parent=11 // pred_fallthru
          _
        // Predicated region
        $region29: #{tpu_custom_call.1} parent=11 // pred_check
          %p295 = pneg %p170
        $region30: #{tpu_custom_call.1} parent=11 // pred_check_branch
          %297 = sbr.rel (%p295) target = $region32
        $region31: #{tpu_custom_call.1} parent=11 // pred_region
          _
        $region32: #{tpu_custom_call.1} parent=11 // pred_fallthru
          _
        // Predicated region
        $region33: #{tpu_custom_call.1} parent=11 // pred_check
          %p298 = pneg %p191
        $region34: #{tpu_custom_call.1} parent=11 // pred_check_branch
          %300 = sbr.rel (%p298) target = $region36
        $region35: #{tpu_custom_call.1} parent=11 // pred_region
          _
        $region36: #{tpu_custom_call.1} parent=11 // pred_fallthru
          _
        // Predicated region
        $region37: #{tpu_custom_call.1} parent=11 // pred_check
          %p301 = pneg %p212
        $region38: #{tpu_custom_call.1} parent=11 // pred_check_branch
          %303 = sbr.rel (%p301) target = $region40
        $region39: #{tpu_custom_call.1} parent=11 // pred_region
          _
        $region40: #{tpu_custom_call.1} parent=11 // pred_fallthru
          _
      $region12: #{tpu_custom_call.1} parent=5 // pred_fallthru
        _
      %p304 = scmp.lt.s32.totalorder %s27, 4
      // Predicated region
      $region41: #{tpu_custom_call.1} parent=5 // pred_check
        %p305 = pneg %p304
      $region42: #{tpu_custom_call.1} parent=5 // pred_check_branch
        %307 = sbr.rel (%p305) target = $region44
      $region43: #{tpu_custom_call.1} parent=5 // pred_region
        // Predicated region
        $region45: #{tpu_custom_call.1} parent=43 // pred_check
          %p308 = pneg %p59
        $region46: #{tpu_custom_call.1} parent=43 // pred_check_branch
          %310 = sbr.rel (%p308) target = $region48
        $region47: #{tpu_custom_call.1} parent=43 // pred_region
          %s311 = sand.u32 %s49, 1
          %s312 = scalar_lea.sflag [#allocation7], %s311
          %s313 = sand.u32 %s49, 1
          %s314 = smul.addr %s313, 64
          %s315 = scalar_lea.vmem [#allocation6], %s314
          %s317 = ssub.s32 1024, 1024
          %318 = vsyncadd %s312, %s317
          %s319 = smul.addr %s34, 8
          %s320 = smul.addr %s319, 128
          %s321 = scalar_lea.hbm %s0, %s320
          %s322 = sshll.u32 %s315, 4
          %s323 = int_to_ptr.vmem [resolvable:$true] %s322
          %328 = dma.hbm_to_vmem [thread:$0]  %s321, 1024, %s323, %s312, 256, 256, 16
        $region48: #{tpu_custom_call.1} parent=43 // pred_fallthru
          _
      $region44: #{tpu_custom_call.1} parent=5 // pred_fallthru
        _
      %p329 = scmp.le.s32.totalorder 1, %s27
      %p330 = scmp.lt.s32.totalorder %s27, 5
      %p331 = pnand %p329, %p330
      %p332 = pneg %p331
      // Predicated region
      $region49: #{tpu_custom_call.1} parent=5 // pred_check
        _
      $region50: #{tpu_custom_call.1} parent=5 // pred_check_branch
        %334 = sbr.rel (%p331) target = $region52
      $region51: #{tpu_custom_call.1} parent=5 // pred_region
        %s335 = ssub.s32 %s27, 1
        %s336 = sand.u32 %s52, 1
        %s337 = scalar_lea.sflag [#allocation7], %s336
        %s338 = sand.u32 %s52, 1
        %s339 = smul.addr %s338, 64
        %s340 = scalar_lea.vmem [#allocation6], %s339
        // Predicated region
        $region53: #{tpu_custom_call.1} parent=51 // pred_check
          %p341 = pneg %p65
        $region54: #{tpu_custom_call.1} parent=51 // pred_check_branch
          %343 = sbr.rel (%p341) target = $region56
        $region55: #{tpu_custom_call.1} parent=51 // pred_region
          %344 = dma.done %s337, 1024
        $region56: #{tpu_custom_call.1} parent=51 // pred_fallthru
          _
        %s345 = sand.u32 %s52, 1
        %s346 = scalar_lea.sflag [#allocation7], %s345
        %s347 = sand.u32 %s52, 1
        %s348 = smul.addr %s347, 64
        %s349 = scalar_lea.vmem [#allocation6], %s348
        %p350 = pneg %p65
        %p351 = pneg %p62
        %p352 = pneg %p86
        %p353 = pneg %p83
        %p354 = pneg %p107
        %p355 = pneg %p104
        %p356 = pneg %p128
        %p357 = pneg %p125
        %p358 = pneg %p149
        %p359 = pneg %p146
        %p360 = pneg %p170
        %p361 = pneg %p167
        %p362 = pneg %p191
        %p363 = pneg %p188
        %p364 = pneg %p212
        %p365 = pneg %p209
        %p366 = pneg %p240
        %p367 = pneg %p237
        %s368 = sand.u32 %s227, 1
        %s369 = scalar_lea.sflag [#allocation8], %s368
        %s370 = sand.u32 %s227, 1
        %s371 = smul.addr %s370, 32
        %s372 = scalar_lea.vmem [#allocation9], %s371
        %p373 = pneg %p268
        %p374 = pneg %p265
        %s375 = sand.u32 %s255, 1
        %s376 = scalar_lea.sflag [#allocation11], %s375
        %s377 = sand.u32 %s255, 1
        %s378 = smul.addr %s377, 256
        %s379 = scalar_lea.vmem [#allocation10], %s378
        %s380 = smul.u32 16, %s37
        %p381 = scmp.eq.s32.totalorder %s37, 0
        // Predicated region
        $region57: #{tpu_custom_call.1} parent=51 // pred_check
          %p382 = pneg %p381
        $region58: #{tpu_custom_call.1} parent=51 // pred_check_branch
          %384 = sbr.rel (%p382) target = $region60
        $region59: #{tpu_custom_call.1} parent=51 // pred_region
          %v385 = vld [vmem:[%s340] sm:$0xff]
          %v386 = vld [vmem:[%s340 + $0x8] sm:$0xff]
          %v387 = vld [vmem:[%s340 + $0x10] sm:$0xff]
          %v388 = vld [vmem:[%s340 + $0x18] sm:$0xff]
          %v389 = vld [vmem:[%s340 + $0x20] sm:$0xff]
          %v390 = vld [vmem:[%s340 + $0x28] sm:$0xff]
          %v391 = vld [vmem:[%s340 + $0x30] sm:$0xff]
          %v392 = vld [vmem:[%s340 + $0x38] sm:$0xff]
          %v393 = vld [vmem:[%s1] sm:$0xf]
          %v394 = vld [vmem:[%s2] sm:$0xf]
          %396 = vset.pattern.permute.xlu0 0
          %397 = vperm.xlu0 %396, %v394
          %v398 = vpop.permute.xlu0 %397
          %vm400 = vcmask 261120
          %v402 = vsel %vm400, %v393, 0
          %404 = vmatprep.subr.mxu0 %v386
          %405 = vmatpush1.msra.mxu0 %v385
          %406 = vmatprep.subr.mxu0 %v388
          %407 = vmatpush1.msra.mxu0 %v387
          %408 = vmatprep.subr.mxu0 %v390
          %409 = vmatpush1.msra.mxu0 %v389
          %410 = vmatprep.subr.mxu0 %v392
          %411 = vmatpush1.msra.mxu0 %v391
          %412 = vmatprep.subr.mxu0 0.0
          %413 = vmatpush1.msra.mxu0 0.0
          %414 = vmatprep.subr.mxu0 0.0
          %415 = vmatpush1.msra.mxu0 0.0
          %416 = vmatprep.subr.mxu0 0.0
          %417 = vmatpush1.msra.mxu0 0.0
          %418 = vmatprep.subr.mxu0 0.0
          %419 = vmatpush1.msra.mxu0 0.0
          %420 = vmatprep.subr.mxu0 0.0
          %421 = vmatpush1.msra.mxu0 0.0
          %422 = vmatprep.subr.mxu0 0.0
          %423 = vmatpush1.msra.mxu0 0.0
          %424 = vmatprep.subr.mxu0 0.0
          %425 = vmatpush1.msra.mxu0 0.0
          %426 = vmatprep.subr.mxu0 0.0
          %427 = vmatpush1.msra.mxu0 0.0
          %428 = vmatprep.subr.mxu0 0.0
          %429 = vmatpush1.msra.mxu0 0.0
          %430 = vmatprep.subr.mxu0 0.0
          %431 = vmatpush1.msra.mxu0 0.0
          %432 = vmatprep.subr.mxu0 0.0
          %433 = vmatpush1.msra.mxu0 0.0
          %434 = vmatprep.subr.mxu0 0.0
          %435 = vmatpush1.msra.mxu0 0.0
          %436 = vmatprep.subr.mxu0 0.0
          %437 = vmatpush1.msra.mxu0 0.0
          %438 = vmatprep.subr.mxu0 0.0
          %439 = vmatpush1.msra.mxu0 0.0
          %440 = vmatprep.subr.mxu0 0.0
          %441 = vmatpush1.msra.mxu0 0.0
          %442 = vmatprep.subr.mxu0 0.0
          %443 = vmatpush1.msra.mxu0 0.0
          %444 = vmatprep.subr.mxu0 0.0
          %445 = vmatpush1.msra.mxu0 0.0
          %446 = vmatprep.subr.mxu0 0.0
          %447 = vmatpush1.msra.mxu0 0.0
          %448 = vmatprep.subr.mxu0 0.0
          %449 = vmatpush1.msra.mxu0 0.0
          %450 = vmatprep.subr.mxu0 0.0
          %451 = vmatpush1.msra.mxu0 0.0
          %452 = vmatprep.subr.mxu0 0.0
          %453 = vmatpush1.msra.mxu0 0.0
          %454 = vmatprep.subr.mxu0 0.0
          %455 = vmatpush1.msra.mxu0 0.0
          %456 = vmatprep.subr.mxu0 0.0
          %457 = vmatpush1.msra.mxu0 0.0
          %458 = vmatprep.subr.mxu0 0.0
          %459 = vmatpush1.msra.mxu0 0.0
          %460 = vmatprep.subr.mxu0 0.0
          %461 = vmatpush1.msra.mxu0 0.0
          %462 = vmatprep.subr.mxu0 0.0
          %463 = vmatpush1.msra.mxu0 0.0
          %464 = vmatprep.subr.mxu0 0.0
          %465 = vmatpush1.msra.mxu0 0.0
          %466 = vmatprep.subr.mxu0 0.0
          %467 = vmatpush1.msra.mxu0 0.0
          %468 = vmatprep.mubr.f32.mxu0 0.0
          %469 = vmatmul.mubr.f32.gmra.mrb[0].mxu0 %v402
          %v470 = vpop.f32.mrb[0].mxu0
          %v471 = vadd.f32 %v398, %v470
          %v472 = vpop.f32.mrb[0].mxu0
          %v473 = vadd.f32 %v398, %v472
          %474 = vdwg.mxu0
          %v477 = vcombine.low %v471, %v473
          %479 = vst [vmem:[#allocation2] sm:$0xff] %v477
          %v480 = vld [vmem:[%s3] sm:$0xf]
          %v481 = vld [vmem:[%s4] sm:$0xf]
          %483 = vset.pattern.permute.xlu0 0
          %484 = vperm.xlu0 %483, %v481
          %v485 = vpop.permute.xlu0 %484
          %v488 = vsel %vm400, %v480, 0
          %490 = vmatprep.subr.mxu0 %v386
          %491 = vmatpush1.msra.mxu0 %v385
          %492 = vmatprep.subr.mxu0 %v388
          %493 = vmatpush1.msra.mxu0 %v387
          %494 = vmatprep.subr.mxu0 %v390
          %495 = vmatpush1.msra.mxu0 %v389
          %496 = vmatprep.subr.mxu0 %v392
          %497 = vmatpush1.msra.mxu0 %v391
          %498 = vmatprep.subr.mxu0 0.0
          %499 = vmatpush1.msra.mxu0 0.0
          %500 = vmatprep.subr.mxu0 0.0
          %501 = vmatpush1.msra.mxu0 0.0
          %502 = vmatprep.subr.mxu0 0.0
          %503 = vmatpush1.msra.mxu0 0.0
          %504 = vmatprep.subr.mxu0 0.0
          %505 = vmatpush1.msra.mxu0 0.0
          %506 = vmatprep.subr.mxu0 0.0
          %507 = vmatpush1.msra.mxu0 0.0
          %508 = vmatprep.subr.mxu0 0.0
          %509 = vmatpush1.msra.mxu0 0.0
          %510 = vmatprep.subr.mxu0 0.0
          %511 = vmatpush1.msra.mxu0 0.0
          %512 = vmatprep.subr.mxu0 0.0
          %513 = vmatpush1.msra.mxu0 0.0
          %514 = vmatprep.subr.mxu0 0.0
          %515 = vmatpush1.msra.mxu0 0.0
          %516 = vmatprep.subr.mxu0 0.0
          %517 = vmatpush1.msra.mxu0 0.0
          %518 = vmatprep.subr.mxu0 0.0
          %519 = vmatpush1.msra.mxu0 0.0
          %520 = vmatprep.subr.mxu0 0.0
          %521 = vmatpush1.msra.mxu0 0.0
          %522 = vmatprep.subr.mxu0 0.0
          %523 = vmatpush1.msra.mxu0 0.0
          %524 = vmatprep.subr.mxu0 0.0
          %525 = vmatpush1.msra.mxu0 0.0
          %526 = vmatprep.subr.mxu0 0.0
          %527 = vmatpush1.msra.mxu0 0.0
          %528 = vmatprep.subr.mxu0 0.0
          %529 = vmatpush1.msra.mxu0 0.0
          %530 = vmatprep.subr.mxu0 0.0
          %531 = vmatpush1.msra.mxu0 0.0
          %532 = vmatprep.subr.mxu0 0.0
          %533 = vmatpush1.msra.mxu0 0.0
          %534 = vmatprep.subr.mxu0 0.0
          %535 = vmatpush1.msra.mxu0 0.0
          %536 = vmatprep.subr.mxu0 0.0
          %537 = vmatpush1.msra.mxu0 0.0
          %538 = vmatprep.subr.mxu0 0.0
          %539 = vmatpush1.msra.mxu0 0.0
          %540 = vmatprep.subr.mxu0 0.0
          %541 = vmatpush1.msra.mxu0 0.0
          %542 = vmatprep.subr.mxu0 0.0
          %543 = vmatpush1.msra.mxu0 0.0
          %544 = vmatprep.subr.mxu0 0.0
          %545 = vmatpush1.msra.mxu0 0.0
          %546 = vmatprep.subr.mxu0 0.0
          %547 = vmatpush1.msra.mxu0 0.0
          %548 = vmatprep.subr.mxu0 0.0
          %549 = vmatpush1.msra.mxu0 0.0
          %550 = vmatprep.subr.mxu0 0.0
          %551 = vmatpush1.msra.mxu0 0.0
          %552 = vmatprep.subr.mxu0 0.0
          %553 = vmatpush1.msra.mxu0 0.0
          %554 = vmatprep.mubr.f32.mxu0 0.0
          %555 = vmatmul.mubr.f32.gmra.mrb[0].mxu0 %v488
          %v556 = vpop.f32.mrb[0].mxu0
          %v557 = vadd.f32 %v485, %v556
          %v558 = vpop.f32.mrb[0].mxu0
          %v559 = vadd.f32 %v485, %v558
          %560 = vdwg.mxu0
          %v563 = vcombine.low %v557, %v559
          %565 = vst [vmem:[#allocation3] sm:$0xff] %v563
          %v566 = vld [vmem:[%s5] sm:$0xff]
          %v567 = vld [vmem:[%s5 + $0x8] sm:$0xff]
          %v568 = vld [vmem:[%s5 + $0x10] sm:$0xff]
          %v569 = vld [vmem:[%s5 + $0x18] sm:$0xff]
          %v570 = vld [vmem:[%s6] sm:$0xff]
          %v571 = vld [vmem:[%s6 + $0x8] sm:$0xff]
          %v572 = vld [vmem:[%s6 + $0x10] sm:$0xff]
          %v573 = vld [vmem:[%s6 + $0x18] sm:$0xff]
          %575 = vset.pattern.permute.xlu0 0
          %576 = vperm.xlu0 %575, %v570
          %v577 = vpop.permute.xlu0 %576
          %580 = vset.pattern.permute.xlu0 0
          %581 = vperm.xlu0 %580, %v571
          %v582 = vpop.permute.xlu0 %581
          %585 = vset.pattern.permute.xlu0 0
          %586 = vperm.xlu0 %585, %v572
          %v587 = vpop.permute.xlu0 %586
          %590 = vset.pattern.permute.xlu0 0
          %591 = vperm.xlu0 %590, %v573
          %v592 = vpop.permute.xlu0 %591
          %v595 = vsel %vm400, %v566, 0
          %v598 = vsel %vm400, %v567, 0
          %v601 = vsel %vm400, %v568, 0
          %v604 = vsel %vm400, %v569, 0
          %606 = vmatprep.subr.mxu0 %v386
          %607 = vmatpush1.msra.mxu0 %v385
          %608 = vmatprep.subr.mxu0 %v388
          %609 = vmatpush1.msra.mxu0 %v387
          %610 = vmatprep.subr.mxu0 %v390
          %611 = vmatpush1.msra.mxu0 %v389
          %612 = vmatprep.subr.mxu0 %v392
          %613 = vmatpush1.msra.mxu0 %v391
          %614 = vmatprep.subr.mxu0 0.0
          %615 = vmatpush1.msra.mxu0 0.0
          %616 = vmatprep.subr.mxu0 0.0
          %617 = vmatpush1.msra.mxu0 0.0
          %618 = vmatprep.subr.mxu0 0.0
          %619 = vmatpush1.msra.mxu0 0.0
          %620 = vmatprep.subr.mxu0 0.0
          %621 = vmatpush1.msra.mxu0 0.0
          %622 = vmatprep.subr.mxu0 0.0
          %623 = vmatpush1.msra.mxu0 0.0
          %624 = vmatprep.subr.mxu0 0.0
          %625 = vmatpush1.msra.mxu0 0.0
          %626 = vmatprep.subr.mxu0 0.0
          %627 = vmatpush1.msra.mxu0 0.0
          %628 = vmatprep.subr.mxu0 0.0
          %629 = vmatpush1.msra.mxu0 0.0
          %630 = vmatprep.subr.mxu0 0.0
          %631 = vmatpush1.msra.mxu0 0.0
          %632 = vmatprep.subr.mxu0 0.0
          %633 = vmatpush1.msra.mxu0 0.0
          %634 = vmatprep.subr.mxu0 0.0
          %635 = vmatpush1.msra.mxu0 0.0
          %636 = vmatprep.subr.mxu0 0.0
          %637 = vmatpush1.msra.mxu0 0.0
          %638 = vmatprep.subr.mxu0 0.0
          %639 = vmatpush1.msra.mxu0 0.0
          %640 = vmatprep.subr.mxu0 0.0
          %641 = vmatpush1.msra.mxu0 0.0
          %642 = vmatprep.subr.mxu0 0.0
          %643 = vmatpush1.msra.mxu0 0.0
          %644 = vmatprep.subr.mxu0 0.0
          %645 = vmatpush1.msra.mxu0 0.0
          %646 = vmatprep.subr.mxu0 0.0
          %647 = vmatpush1.msra.mxu0 0.0
          %648 = vmatprep.subr.mxu0 0.0
          %649 = vmatpush1.msra.mxu0 0.0
          %650 = vmatprep.subr.mxu0 0.0
          %651 = vmatpush1.msra.mxu0 0.0
          %652 = vmatprep.subr.mxu0 0.0
          %653 = vmatpush1.msra.mxu0 0.0
          %654 = vmatprep.subr.mxu0 0.0
          %655 = vmatpush1.msra.mxu0 0.0
          %656 = vmatprep.subr.mxu0 0.0
          %657 = vmatpush1.msra.mxu0 0.0
          %658 = vmatprep.subr.mxu0 0.0
          %659 = vmatpush1.msra.mxu0 0.0
          %660 = vmatprep.subr.mxu0 0.0
          %661 = vmatpush1.msra.mxu0 0.0
          %662 = vmatprep.subr.mxu0 0.0
          %663 = vmatpush1.msra.mxu0 0.0
          %664 = vmatprep.subr.mxu0 0.0
          %665 = vmatpush1.msra.mxu0 0.0
          %666 = vmatprep.subr.mxu0 0.0
          %667 = vmatpush1.msra.mxu0 0.0
          %668 = vmatprep.subr.mxu0 0.0
          %669 = vmatpush1.msra.mxu0 0.0
          %670 = vmatprep.mubr.f32.mxu0 0.0
          %671 = vmatmul.mubr.f32.gmra.mrb[0].mxu0 %v595
          %v672 = vpop.f32.mrb[0].mxu0
          %v673 = vadd.f32 %v577, %v672
          %v674 = vpop.f32.mrb[0].mxu0
          %v675 = vadd.f32 %v577, %v674
          %676 = vmatprep.mubr.f32.mxu0 0.0
          %677 = vmatmul.mubr.f32.gmra.mrb[0].mxu0 %v598
          %v678 = vpop.f32.mrb[0].mxu0
          %v679 = vadd.f32 %v582, %v678
          %v680 = vpop.f32.mrb[0].mxu0
          %v681 = vadd.f32 %v582, %v680
          %682 = vmatprep.mubr.f32.mxu0 0.0
          %683 = vmatmul.mubr.f32.gmra.mrb[0].mxu0 %v601
          %v684 = vpop.f32.mrb[0].mxu0
          %v685 = vadd.f32 %v587, %v684
          %v686 = vpop.f32.mrb[0].mxu0
          %v687 = vadd.f32 %v587, %v686
          %688 = vmatprep.mubr.f32.mxu0 0.0
          %689 = vmatmul.mubr.f32.gmra.mrb[0].mxu0 %v604
          %v690 = vpop.f32.mrb[0].mxu0
          %v691 = vadd.f32 %v592, %v690
          %v692 = vpop.f32.mrb[0].mxu0
          %v693 = vadd.f32 %v592, %v692
          %694 = vdwg.mxu0
          %695 = vst [vmem:[#allocation4] sm:$0xff] %v673
          %696 = vst [vmem:[#allocation4 + $0x8] sm:$0xff] %v675
          %697 = vst [vmem:[#allocation4 + $0x10] sm:$0xff] %v679
          %698 = vst [vmem:[#allocation4 + $0x18] sm:$0xff] %v681
          %699 = vst [vmem:[#allocation4 + $0x20] sm:$0xff] %v685
          %700 = vst [vmem:[#allocation4 + $0x28] sm:$0xff] %v687
          %701 = vst [vmem:[#allocation4 + $0x30] sm:$0xff] %v691
          %702 = vst [vmem:[#allocation4 + $0x38] sm:$0xff] %v693
        $region60: #{tpu_custom_call.1} parent=51 // pred_fallthru
          _
        %s703 = smul.u32 %s37, 128
        %s704 = sshra.s32 %s703, 7
        %s705 = sand.u32 %s703, 127
        %s706 = smul.addr %s704, 4
        %s707 = scalar_lea.vmem [#allocation2], %s706
        %v708 = vld [vmem:[%s707] sm:$0xf]
        %v709 = vld [vmem:[#allocation3] sm:$0xff]
        %710 = vxpose.xlu0.b32.start [1/16] %v708, 128
        %711 = vxpose.xlu0.b32.cont [2/16] 0.0, 128
        %712 = vxpose.xlu0.b32.cont [3/16] 0.0, 128
        %713 = vxpose.xlu0.b32.cont [4/16] 0.0, 128
        %714 = vxpose.xlu0.b32.cont [5/16] 0.0, 128
        %715 = vxpose.xlu0.b32.cont [6/16] 0.0, 128
        %716 = vxpose.xlu0.b32.cont [7/16] 0.0, 128
        %717 = vxpose.xlu0.b32.cont [8/16] 0.0, 128
        %718 = vxpose.xlu0.b32.cont [9/16] 0.0, 128
        %719 = vxpose.xlu0.b32.cont [10/16] 0.0, 128
        %720 = vxpose.xlu0.b32.cont [11/16] 0.0, 128
        %721 = vxpose.xlu0.b32.cont [12/16] 0.0, 128
        %722 = vxpose.xlu0.b32.cont [13/16] 0.0, 128
        %723 = vxpose.xlu0.b32.cont [14/16] 0.0, 128
        %724 = vxpose.xlu0.b32.cont [15/16] 0.0, 128
        %725 = vxpose.xlu0.b32.end [16/16] 0.0, 128
        %v726 = vpop.trf.xlu0
        %v727 = vpop.trf.xlu0
        %v728 = vpop.trf.xlu0
        %v729 = vpop.trf.xlu0
        %v730 = vpop.trf.xlu0
        %v731 = vpop.trf.xlu0
        %v732 = vpop.trf.xlu0
        %v733 = vpop.trf.xlu0
        %v734 = vpop.trf.xlu0
        %v735 = vpop.trf.xlu0
        %v736 = vpop.trf.xlu0
        %v737 = vpop.trf.xlu0
        %v738 = vpop.trf.xlu0
        %v739 = vpop.trf.xlu0
        %v740 = vpop.trf.xlu0
        %v741 = vpop.trf.xlu0
        %v743 = vcombine.high %v709, %v709
        %vm744 = vcmask 31744
        %v746 = vsel %vm744, %v726, 0
        %v749 = vsel %vm744, %v727, 0
        %v752 = vsel %vm744, %v728, 0
        %v755 = vsel %vm744, %v729, 0
        %v758 = vsel %vm744, %v730, 0
        %v761 = vsel %vm744, %v731, 0
        %v764 = vsel %vm744, %v732, 0
        %v767 = vsel %vm744, %v733, 0
        %v770 = vsel %vm744, %v734, 0
        %v773 = vsel %vm744, %v735, 0
        %v776 = vsel %vm744, %v736, 0
        %v779 = vsel %vm744, %v737, 0
        %v782 = vsel %vm744, %v738, 0
        %v785 = vsel %vm744, %v739, 0
        %v788 = vsel %vm744, %v740, 0
        %v791 = vsel %vm744, %v741, 0
        %vm793 = vcmask 1043456
        %v794 = vsel %vm793, %v709, 0
        %v796 = vsel %vm793, %v743, 0
        %798 = vmatprep.subr.mxu0 %v796
        %799 = vmatpush1.msra.mxu0 %v794
        %800 = vmatprep.subr.mxu0 0.0
        %801 = vmatpush1.msra.mxu0 0.0
        %802 = vmatprep.subr.mxu0 0.0
        %803 = vmatpush1.msra.mxu0 0.0
        %804 = vmatprep.subr.mxu0 0.0
        %805 = vmatpush1.msra.mxu0 0.0
        %806 = vmatprep.subr.mxu0 0.0
        %807 = vmatpush1.msra.mxu0 0.0
        %808 = vmatprep.subr.mxu0 0.0
        %809 = vmatpush1.msra.mxu0 0.0
        %810 = vmatprep.subr.mxu0 0.0
        %811 = vmatpush1.msra.mxu0 0.0
        %812 = vmatprep.subr.mxu0 0.0
        %813 = vmatpush1.msra.mxu0 0.0
        %814 = vmatprep.subr.mxu0 0.0
        %815 = vmatpush1.msra.mxu0 0.0
        %816 = vmatprep.subr.mxu0 0.0
        %817 = vmatpush1.msra.mxu0 0.0
        %818 = vmatprep.subr.mxu0 0.0
        %819 = vmatpush1.msra.mxu0 0.0
        %820 = vmatprep.subr.mxu0 0.0
        %821 = vmatpush1.msra.mxu0 0.0
        %822 = vmatprep.subr.mxu0 0.0
        %823 = vmatpush1.msra.mxu0 0.0
        %824 = vmatprep.subr.mxu0 0.0
        %825 = vmatpush1.msra.mxu0 0.0
        %826 = vmatprep.subr.mxu0 0.0
        %827 = vmatpush1.msra.mxu0 0.0
        %828 = vmatprep.subr.mxu0 0.0
        %829 = vmatpush1.msra.mxu0 0.0
        %830 = vmatprep.subr.mxu0 0.0
        %831 = vmatpush1.msra.mxu0 0.0
        %832 = vmatprep.subr.mxu0 0.0
        %833 = vmatpush1.msra.mxu0 0.0
        %834 = vmatprep.subr.mxu0 0.0
        %835 = vmatpush1.msra.mxu0 0.0
        %836 = vmatprep.subr.mxu0 0.0
        %837 = vmatpush1.msra.mxu0 0.0
        %838 = vmatprep.subr.mxu0 0.0
        %839 = vmatpush1.msra.mxu0 0.0
        %840 = vmatprep.subr.mxu0 0.0
        %841 = vmatpush1.msra.mxu0 0.0
        %842 = vmatprep.subr.mxu0 0.0
        %843 = vmatpush1.msra.mxu0 0.0
        %844 = vmatprep.subr.mxu0 0.0
        %845 = vmatpush1.msra.mxu0 0.0
        %846 = vmatprep.subr.mxu0 0.0
        %847 = vmatpush1.msra.mxu0 0.0
        %848 = vmatprep.subr.mxu0 0.0
        %849 = vmatpush1.msra.mxu0 0.0
        %850 = vmatprep.subr.mxu0 0.0
        %851 = vmatpush1.msra.mxu0 0.0
        %852 = vmatprep.subr.mxu0 0.0
        %853 = vmatpush1.msra.mxu0 0.0
        %854 = vmatprep.subr.mxu0 0.0
        %855 = vmatpush1.msra.mxu0 0.0
        %856 = vmatprep.subr.mxu0 0.0
        %857 = vmatpush1.msra.mxu0 0.0
        %858 = vmatprep.subr.mxu0 0.0
        %859 = vmatpush1.msra.mxu0 0.0
        %860 = vmatprep.subr.mxu0 0.0
        %861 = vmatpush1.msra.mxu0 0.0
        %862 = vmatprep.mubr.f32.mxu0 0.0
        %863 = vmatmul.mubr.f32.gmra.mrb[0].mxu0 %v746
        %v864 = vpop.f32.mrb[0].mxu0
        %v865 = vadd.f32 0.0, %v864
        %v866 = vpop.f32.mrb[0].mxu0
        %v867 = vadd.f32 0.0, %v866
        %868 = vmatprep.mubr.f32.mxu0 0.0
        %869 = vmatmul.mubr.f32.gmra.mrb[0].mxu0 %v749
        %v870 = vpop.f32.mrb[0].mxu0
        %v871 = vadd.f32 0.0, %v870
        %v872 = vpop.f32.mrb[0].mxu0
        %v873 = vadd.f32 0.0, %v872
        %874 = vmatprep.mubr.f32.mxu0 0.0
        %875 = vmatmul.mubr.f32.gmra.mrb[0].mxu0 %v752
        %v876 = vpop.f32.mrb[0].mxu0
        %v877 = vadd.f32 0.0, %v876
        %v878 = vpop.f32.mrb[0].mxu0
        %v879 = vadd.f32 0.0, %v878
        %880 = vmatprep.mubr.f32.mxu0 0.0
        %881 = vmatmul.mubr.f32.gmra.mrb[0].mxu0 %v755
        %v882 = vpop.f32.mrb[0].mxu0
        %v883 = vadd.f32 0.0, %v882
        %v884 = vpop.f32.mrb[0].mxu0
        %v885 = vadd.f32 0.0, %v884
        %886 = vmatprep.mubr.f32.mxu0 0.0
        %887 = vmatmul.mubr.f32.gmra.mrb[0].mxu0 %v758
        %v888 = vpop.f32.mrb[0].mxu0
        %v889 = vadd.f32 0.0, %v888
        %v890 = vpop.f32.mrb[0].mxu0
        %v891 = vadd.f32 0.0, %v890
        %892 = vmatprep.mubr.f32.mxu0 0.0
        %893 = vmatmul.mubr.f32.gmra.mrb[0].mxu0 %v761
        %v894 = vpop.f32.mrb[0].mxu0
        %v895 = vadd.f32 0.0, %v894
        %v896 = vpop.f32.mrb[0].mxu0
        %v897 = vadd.f32 0.0, %v896
        %898 = vmatprep.mubr.f32.mxu0 0.0
        %899 = vmatmul.mubr.f32.gmra.mrb[0].mxu0 %v764
        %v900 = vpop.f32.mrb[0].mxu0
        %v901 = vadd.f32 0.0, %v900
        %v902 = vpop.f32.mrb[0].mxu0
        %v903 = vadd.f32 0.0, %v902
        %904 = vmatprep.mubr.f32.mxu0 0.0
        %905 = vmatmul.mubr.f32.gmra.mrb[0].mxu0 %v767
        %v906 = vpop.f32.mrb[0].mxu0
        %v907 = vadd.f32 0.0, %v906
        %v908 = vpop.f32.mrb[0].mxu0
        %v909 = vadd.f32 0.0, %v908
        %910 = vmatprep.mubr.f32.mxu0 0.0
        %911 = vmatmul.mubr.f32.gmra.mrb[0].mxu0 %v770
        %v912 = vpop.f32.mrb[0].mxu0
        %v913 = vadd.f32 0.0, %v912
        %v914 = vpop.f32.mrb[0].mxu0
        %v915 = vadd.f32 0.0, %v914
        %916 = vmatprep.mubr.f32.mxu0 0.0
        %917 = vmatmul.mubr.f32.gmra.mrb[0].mxu0 %v773
        %v918 = vpop.f32.mrb[0].mxu0
        %v919 = vadd.f32 0.0, %v918
        %v920 = vpop.f32.mrb[0].mxu0
        %v921 = vadd.f32 0.0, %v920
        %922 = vmatprep.mubr.f32.mxu0 0.0
        %923 = vmatmul.mubr.f32.gmra.mrb[0].mxu0 %v776
        %v924 = vpop.f32.mrb[0].mxu0
        %v925 = vadd.f32 0.0, %v924
        %v926 = vpop.f32.mrb[0].mxu0
        %v927 = vadd.f32 0.0, %v926
        %928 = vmatprep.mubr.f32.mxu0 0.0
        %929 = vmatmul.mubr.f32.gmra.mrb[0].mxu0 %v779
        %v930 = vpop.f32.mrb[0].mxu0
        %v931 = vadd.f32 0.0, %v930
        %v932 = vpop.f32.mrb[0].mxu0
        %v933 = vadd.f32 0.0, %v932
        %934 = vmatprep.mubr.f32.mxu0 0.0
        %935 = vmatmul.mubr.f32.gmra.mrb[0].mxu0 %v782
        %v936 = vpop.f32.mrb[0].mxu0
        %v937 = vadd.f32 0.0, %v936
        %v938 = vpop.f32.mrb[0].mxu0
        %v939 = vadd.f32 0.0, %v938
        %940 = vmatprep.mubr.f32.mxu0 0.0
        %941 = vmatmul.mubr.f32.gmra.mrb[0].mxu0 %v785
        %v942 = vpop.f32.mrb[0].mxu0
        %v943 = vadd.f32 0.0, %v942
        %v944 = vpop.f32.mrb[0].mxu0
        %v945 = vadd.f32 0.0, %v944
        %946 = vmatprep.mubr.f32.mxu0 0.0
        %947 = vmatmul.mubr.f32.gmra.mrb[0].mxu0 %v788
        %v948 = vpop.f32.mrb[0].mxu0
        %v949 = vadd.f32 0.0, %v948
        %v950 = vpop.f32.mrb[0].mxu0
        %v951 = vadd.f32 0.0, %v950
        %952 = vmatprep.mubr.f32.mxu0 0.0
        %953 = vmatmul.mubr.f32.gmra.mrb[0].mxu0 %v791
        %v954 = vpop.f32.mrb[0].mxu0
        %v955 = vadd.f32 0.0, %v954
        %v956 = vpop.f32.mrb[0].mxu0
        %v957 = vadd.f32 0.0, %v956
        %958 = vdwg.mxu0
        %v959 = vmax.f32 %v865, %v867
        %960 = vmax.xlane.f32.xlu0 %v959
        %v961 = vpop.xlane.xlu0 %960
        %v962 = vmax.f32 %v871, %v873
        %963 = vmax.xlane.f32.xlu0 %v962
        %v964 = vpop.xlane.xlu0 %963
        %v965 = vmax.f32 %v877, %v879
        %966 = vmax.xlane.f32.xlu0 %v965
        %v967 = vpop.xlane.xlu0 %966
        %v968 = vmax.f32 %v883, %v885
        %969 = vmax.xlane.f32.xlu0 %v968
        %v970 = vpop.xlane.xlu0 %969
        %v971 = vmax.f32 %v889, %v891
        %972 = vmax.xlane.f32.xlu0 %v971
        %v973 = vpop.xlane.xlu0 %972
        %v974 = vmax.f32 %v895, %v897
        %975 = vmax.xlane.f32.xlu0 %v974
        %v976 = vpop.xlane.xlu0 %975
        %v977 = vmax.f32 %v901, %v903
        %978 = vmax.xlane.f32.xlu0 %v977
        %v979 = vpop.xlane.xlu0 %978
        %v980 = vmax.f32 %v907, %v909
        %981 = vmax.xlane.f32.xlu0 %v980
        %v982 = vpop.xlane.xlu0 %981
        %v983 = vmax.f32 %v913, %v915
        %984 = vmax.xlane.f32.xlu0 %v983
        %v985 = vpop.xlane.xlu0 %984
        %v986 = vmax.f32 %v919, %v921
        %987 = vmax.xlane.f32.xlu0 %v986
        %v988 = vpop.xlane.xlu0 %987
        %v989 = vmax.f32 %v925, %v927
        %990 = vmax.xlane.f32.xlu0 %v989
        %v991 = vpop.xlane.xlu0 %990
        %v992 = vmax.f32 %v931, %v933
        %993 = vmax.xlane.f32.xlu0 %v992
        %v994 = vpop.xlane.xlu0 %993
        %v995 = vmax.f32 %v937, %v939
        %996 = vmax.xlane.f32.xlu0 %v995
        %v997 = vpop.xlane.xlu0 %996
        %v998 = vmax.f32 %v943, %v945
        %999 = vmax.xlane.f32.xlu0 %v998
        %v1000 = vpop.xlane.xlu0 %999
        %v1001 = vmax.f32 %v949, %v951
        %1002 = vmax.xlane.f32.xlu0 %v1001
        %v1003 = vpop.xlane.xlu0 %1002
        %v1004 = vmax.f32 %v955, %v957
        %1005 = vmax.xlane.f32.xlu0 %v1004
        %v1006 = vpop.xlane.xlu0 %1005
        %v1007 = vsub.f32 %v865, %v961
        %v1008 = vsub.f32 %v867, %v961
        %v1009 = vsub.f32 %v871, %v964
        %v1010 = vsub.f32 %v873, %v964
        %v1011 = vsub.f32 %v877, %v967
        %v1012 = vsub.f32 %v879, %v967
        %v1013 = vsub.f32 %v883, %v970
        %v1014 = vsub.f32 %v885, %v970
        %v1015 = vsub.f32 %v889, %v973
        %v1016 = vsub.f32 %v891, %v973
        %v1017 = vsub.f32 %v895, %v976
        %v1018 = vsub.f32 %v897, %v976
        %v1019 = vsub.f32 %v901, %v979
        %v1020 = vsub.f32 %v903, %v979
        %v1021 = vsub.f32 %v907, %v982
        %v1022 = vsub.f32 %v909, %v982
        %v1023 = vsub.f32 %v913, %v985
        %v1024 = vsub.f32 %v915, %v985
        %v1025 = vsub.f32 %v919, %v988
        %v1026 = vsub.f32 %v921, %v988
        %v1027 = vsub.f32 %v925, %v991
        %v1028 = vsub.f32 %v927, %v991
        %v1029 = vsub.f32 %v931, %v994
        %v1030 = vsub.f32 %v933, %v994
        %v1031 = vsub.f32 %v937, %v997
        %v1032 = vsub.f32 %v939, %v997
        %v1033 = vsub.f32 %v943, %v1000
        %v1034 = vsub.f32 %v945, %v1000
        %v1035 = vsub.f32 %v949, %v1003
        %v1036 = vsub.f32 %v951, %v1003
        %v1037 = vsub.f32 %v955, %v1006
        %v1038 = vsub.f32 %v957, %v1006
        %v1039 = vmul.f32 %v1007, 1.442695
        %v1040 = vpow.pop %v1039
        %v1041 = vmul.f32 %v1008, 1.442695
        %v1042 = vpow.pop %v1041
        %v1043 = vmul.f32 %v1009, 1.442695
        %v1044 = vpow.pop %v1043
        %v1045 = vmul.f32 %v1010, 1.442695
        %v1046 = vpow.pop %v1045
        %v1047 = vmul.f32 %v1011, 1.442695
        %v1048 = vpow.pop %v1047
        %v1049 = vmul.f32 %v1012, 1.442695
        %v1050 = vpow.pop %v1049
        %v1051 = vmul.f32 %v1013, 1.442695
        %v1052 = vpow.pop %v1051
        %v1053 = vmul.f32 %v1014, 1.442695
        %v1054 = vpow.pop %v1053
        %v1055 = vmul.f32 %v1015, 1.442695
        %v1056 = vpow.pop %v1055
        %v1057 = vmul.f32 %v1016, 1.442695
        %v1058 = vpow.pop %v1057
        %v1059 = vmul.f32 %v1017, 1.442695
        %v1060 = vpow.pop %v1059
        %v1061 = vmul.f32 %v1018, 1.442695
        %v1062 = vpow.pop %v1061
        %v1063 = vmul.f32 %v1019, 1.442695
        %v1064 = vpow.pop %v1063
        %v1065 = vmul.f32 %v1020, 1.442695
        %v1066 = vpow.pop %v1065
        %v1067 = vmul.f32 %v1021, 1.442695
        %v1068 = vpow.pop %v1067
        %v1069 = vmul.f32 %v1022, 1.442695
        %v1070 = vpow.pop %v1069
        %v1071 = vmul.f32 %v1023, 1.442695
        %v1072 = vpow.pop %v1071
        %v1073 = vmul.f32 %v1024, 1.442695
        %v1074 = vpow.pop %v1073
        %v1075 = vmul.f32 %v1025, 1.442695
        %v1076 = vpow.pop %v1075
        %v1077 = vmul.f32 %v1026, 1.442695
        %v1078 = vpow.pop %v1077
        %v1079 = vmul.f32 %v1027, 1.442695
        %v1080 = vpow.pop %v1079
        %v1081 = vmul.f32 %v1028, 1.442695
        %v1082 = vpow.pop %v1081
        %v1083 = vmul.f32 %v1029, 1.442695
        %v1084 = vpow.pop %v1083
        %v1085 = vmul.f32 %v1030, 1.442695
        %v1086 = vpow.pop %v1085
        %v1087 = vmul.f32 %v1031, 1.442695
        %v1088 = vpow.pop %v1087
        %v1089 = vmul.f32 %v1032, 1.442695
        %v1090 = vpow.pop %v1089
        %v1091 = vmul.f32 %v1033, 1.442695
        %v1092 = vpow.pop %v1091
        %v1093 = vmul.f32 %v1034, 1.442695
        %v1094 = vpow.pop %v1093
        %v1095 = vmul.f32 %v1035, 1.442695
        %v1096 = vpow.pop %v1095
        %v1097 = vmul.f32 %v1036, 1.442695
        %v1098 = vpow.pop %v1097
        %v1099 = vmul.f32 %v1037, 1.442695
        %v1100 = vpow.pop %v1099
        %v1101 = vmul.f32 %v1038, 1.442695
        %v1102 = vpow.pop %v1101
        %v1103 = vadd.f32 %v1040, %v1042
        %1104 = vadd.xlane.f32.xlu0 %v1103
        %v1105 = vpop.xlane.xlu0 %1104
        %v1106 = vadd.f32 %v1044, %v1046
        %1107 = vadd.xlane.f32.xlu0 %v1106
        %v1108 = vpop.xlane.xlu0 %1107
        %v1109 = vadd.f32 %v1048, %v1050
        %1110 = vadd.xlane.f32.xlu0 %v1109
        %v1111 = vpop.xlane.xlu0 %1110
        %v1112 = vadd.f32 %v1052, %v1054
        %1113 = vadd.xlane.f32.xlu0 %v1112
        %v1114 = vpop.xlane.xlu0 %1113
        %v1115 = vadd.f32 %v1056, %v1058
        %1116 = vadd.xlane.f32.xlu0 %v1115
        %v1117 = vpop.xlane.xlu0 %1116
        %v1118 = vadd.f32 %v1060, %v1062
        %1119 = vadd.xlane.f32.xlu0 %v1118
        %v1120 = vpop.xlane.xlu0 %1119
        %v1121 = vadd.f32 %v1064, %v1066
        %1122 = vadd.xlane.f32.xlu0 %v1121
        %v1123 = vpop.xlane.xlu0 %1122
        %v1124 = vadd.f32 %v1068, %v1070
        %1125 = vadd.xlane.f32.xlu0 %v1124
        %v1126 = vpop.xlane.xlu0 %1125
        %v1127 = vadd.f32 %v1072, %v1074
        %1128 = vadd.xlane.f32.xlu0 %v1127
        %v1129 = vpop.xlane.xlu0 %1128
        %v1130 = vadd.f32 %v1076, %v1078
        %1131 = vadd.xlane.f32.xlu0 %v1130
        %v1132 = vpop.xlane.xlu0 %1131
        %v1133 = vadd.f32 %v1080, %v1082
        %1134 = vadd.xlane.f32.xlu0 %v1133
        %v1135 = vpop.xlane.xlu0 %1134
        %v1136 = vadd.f32 %v1084, %v1086
        %1137 = vadd.xlane.f32.xlu0 %v1136
        %v1138 = vpop.xlane.xlu0 %1137
        %v1139 = vadd.f32 %v1088, %v1090
        %1140 = vadd.xlane.f32.xlu0 %v1139
        %v1141 = vpop.xlane.xlu0 %1140
        %v1142 = vadd.f32 %v1092, %v1094
        %1143 = vadd.xlane.f32.xlu0 %v1142
        %v1144 = vpop.xlane.xlu0 %1143
        %v1145 = vadd.f32 %v1096, %v1098
        %1146 = vadd.xlane.f32.xlu0 %v1145
        %v1147 = vpop.xlane.xlu0 %1146
        %v1148 = vadd.f32 %v1100, %v1102
        %1149 = vadd.xlane.f32.xlu0 %v1148
        %v1150 = vpop.xlane.xlu0 %1149
        %v1151 = vrcp.pop %v1105
        %v1152 = vmul.f32 %v1040, %v1151
        %v1153 = vmul.f32 %v1042, %v1151
        %v1154 = vrcp.pop %v1108
        %v1155 = vmul.f32 %v1044, %v1154
        %v1156 = vmul.f32 %v1046, %v1154
        %v1157 = vrcp.pop %v1111
        %v1158 = vmul.f32 %v1048, %v1157
        %v1159 = vmul.f32 %v1050, %v1157
        %v1160 = vrcp.pop %v1114
        %v1161 = vmul.f32 %v1052, %v1160
        %v1162 = vmul.f32 %v1054, %v1160
        %v1163 = vrcp.pop %v1117
        %v1164 = vmul.f32 %v1056, %v1163
        %v1165 = vmul.f32 %v1058, %v1163
        %v1166 = vrcp.pop %v1120
        %v1167 = vmul.f32 %v1060, %v1166
        %v1168 = vmul.f32 %v1062, %v1166
        %v1169 = vrcp.pop %v1123
        %v1170 = vmul.f32 %v1064, %v1169
        %v1171 = vmul.f32 %v1066, %v1169
        %v1172 = vrcp.pop %v1126
        %v1173 = vmul.f32 %v1068, %v1172
        %v1174 = vmul.f32 %v1070, %v1172
        %v1175 = vrcp.pop %v1129
        %v1176 = vmul.f32 %v1072, %v1175
        %v1177 = vmul.f32 %v1074, %v1175
        %v1178 = vrcp.pop %v1132
        %v1179 = vmul.f32 %v1076, %v1178
        %v1180 = vmul.f32 %v1078, %v1178
        %v1181 = vrcp.pop %v1135
        %v1182 = vmul.f32 %v1080, %v1181
        %v1183 = vmul.f32 %v1082, %v1181
        %v1184 = vrcp.pop %v1138
        %v1185 = vmul.f32 %v1084, %v1184
        %v1186 = vmul.f32 %v1086, %v1184
        %v1187 = vrcp.pop %v1141
        %v1188 = vmul.f32 %v1088, %v1187
        %v1189 = vmul.f32 %v1090, %v1187
        %v1190 = vrcp.pop %v1144
        %v1191 = vmul.f32 %v1092, %v1190
        %v1192 = vmul.f32 %v1094, %v1190
        %v1193 = vrcp.pop %v1147
        %v1194 = vmul.f32 %v1096, %v1193
        %v1195 = vmul.f32 %v1098, %v1193
        %v1196 = vrcp.pop %v1150
        %v1197 = vmul.f32 %v1100, %v1196
        %v1198 = vmul.f32 %v1102, %v1196
        %1199 = vst [vmem:[%s379] sm:$0xff] %v1152
        %1200 = vst [vmem:[%s379 + $0x8] sm:$0xff] %v1153
        %1201 = vst [vmem:[%s379 + $0x10] sm:$0xff] %v1155
        %1202 = vst [vmem:[%s379 + $0x18] sm:$0xff] %v1156
        %1203 = vst [vmem:[%s379 + $0x20] sm:$0xff] %v1158
        %1204 = vst [vmem:[%s379 + $0x28] sm:$0xff] %v1159
        %1205 = vst [vmem:[%s379 + $0x30] sm:$0xff] %v1161
        %1206 = vst [vmem:[%s379 + $0x38] sm:$0xff] %v1162
        %1207 = vst [vmem:[%s379 + $0x40] sm:$0xff] %v1164
        %1208 = vst [vmem:[%s379 + $0x48] sm:$0xff] %v1165
        %1209 = vst [vmem:[%s379 + $0x50] sm:$0xff] %v1167
        %1210 = vst [vmem:[%s379 + $0x58] sm:$0xff] %v1168
        %1211 = vst [vmem:[%s379 + $0x60] sm:$0xff] %v1170
        %1212 = vst [vmem:[%s379 + $0x68] sm:$0xff] %v1171
        %1213 = vst [vmem:[%s379 + $0x70] sm:$0xff] %v1173
        %1214 = vst [vmem:[%s379 + $0x78] sm:$0xff] %v1174
        %1215 = vst [vmem:[%s379 + $0x80] sm:$0xff] %v1176
        %1216 = vst [vmem:[%s379 + $0x88] sm:$0xff] %v1177
        %1217 = vst [vmem:[%s379 + $0x90] sm:$0xff] %v1179
        %1218 = vst [vmem:[%s379 + $0x98] sm:$0xff] %v1180
        %1219 = vst [vmem:[%s379 + $0xa0] sm:$0xff] %v1182
        %1220 = vst [vmem:[%s379 + $0xa8] sm:$0xff] %v1183
        %1221 = vst [vmem:[%s379 + $0xb0] sm:$0xff] %v1185
        %1222 = vst [vmem:[%s379 + $0xb8] sm:$0xff] %v1186
        %1223 = vst [vmem:[%s379 + $0xc0] sm:$0xff] %v1188
        %1224 = vst [vmem:[%s379 + $0xc8] sm:$0xff] %v1189
        %1225 = vst [vmem:[%s379 + $0xd0] sm:$0xff] %v1191
        %1226 = vst [vmem:[%s379 + $0xd8] sm:$0xff] %v1192
        %1227 = vst [vmem:[%s379 + $0xe0] sm:$0xff] %v1194
        %1228 = vst [vmem:[%s379 + $0xe8] sm:$0xff] %v1195
        %1229 = vst [vmem:[%s379 + $0xf0] sm:$0xff] %v1197
        %1230 = vst [vmem:[%s379 + $0xf8] sm:$0xff] %v1198
        %v1231 = vld [vmem:[#allocation4] sm:$0xff]
        %v1232 = vld [vmem:[#allocation4 + $0x8] sm:$0xff]
        %v1233 = vld [vmem:[#allocation4 + $0x10] sm:$0xff]
        %v1234 = vld [vmem:[#allocation4 + $0x18] sm:$0xff]
        %v1235 = vld [vmem:[#allocation4 + $0x20] sm:$0xff]
        %v1236 = vld [vmem:[#allocation4 + $0x28] sm:$0xff]
        %v1237 = vld [vmem:[#allocation4 + $0x30] sm:$0xff]
        %v1238 = vld [vmem:[#allocation4 + $0x38] sm:$0xff]
        %1239 = vmatprep.subr.mxu0 %v1153
        %1240 = vmatpush1.xpose.msra.mxu0 %v1152
        %1241 = vmatprep.subr.mxu0 %v1156
        %1242 = vmatpush1.xpose.msra.mxu0 %v1155
        %1243 = vmatprep.subr.mxu0 %v1159
        %1244 = vmatpush1.xpose.msra.mxu0 %v1158
        %1245 = vmatprep.subr.mxu0 %v1162
        %1246 = vmatpush1.xpose.msra.mxu0 %v1161
        %1247 = vmatprep.subr.mxu0 %v1165
        %1248 = vmatpush1.xpose.msra.mxu0 %v1164
        %1249 = vmatprep.subr.mxu0 %v1168
        %1250 = vmatpush1.xpose.msra.mxu0 %v1167
        %1251 = vmatprep.subr.mxu0 %v1171
        %1252 = vmatpush1.xpose.msra.mxu0 %v1170
        %1253 = vmatprep.subr.mxu0 %v1174
        %1254 = vmatpush1.xpose.msra.mxu0 %v1173
        %1255 = vmatprep.subr.mxu0 %v1177
        %1256 = vmatpush1.xpose.msra.mxu0 %v1176
        %1257 = vmatprep.subr.mxu0 %v1180
        %1258 = vmatpush1.xpose.msra.mxu0 %v1179
        %1259 = vmatprep.subr.mxu0 %v1183
        %1260 = vmatpush1.xpose.msra.mxu0 %v1182
        %1261 = vmatprep.subr.mxu0 %v1186
        %1262 = vmatpush1.xpose.msra.mxu0 %v1185
        %1263 = vmatprep.subr.mxu0 %v1189
        %1264 = vmatpush1.xpose.msra.mxu0 %v1188
        %1265 = vmatprep.subr.mxu0 %v1192
        %1266 = vmatpush1.xpose.msra.mxu0 %v1191
        %1267 = vmatprep.subr.mxu0 %v1195
        %1268 = vmatpush1.xpose.msra.mxu0 %v1194
        %1269 = vmatprep.subr.mxu0 %v1198
        %1270 = vmatpush1.xpose.msra.mxu0 %v1197
        %1271 = vmatprep.subr.mxu0 0.0
        %1272 = vmatpush1.xpose.msra.mxu0 0.0
        %1273 = vmatprep.subr.mxu0 0.0
        %1274 = vmatpush1.xpose.msra.mxu0 0.0
        %1275 = vmatprep.subr.mxu0 0.0
        %1276 = vmatpush1.xpose.msra.mxu0 0.0
        %1277 = vmatprep.subr.mxu0 0.0
        %1278 = vmatpush1.xpose.msra.mxu0 0.0
        %1279 = vmatprep.subr.mxu0 0.0
        %1280 = vmatpush1.xpose.msra.mxu0 0.0
        %1281 = vmatprep.subr.mxu0 0.0
        %1282 = vmatpush1.xpose.msra.mxu0 0.0
        %1283 = vmatprep.subr.mxu0 0.0
        %1284 = vmatpush1.xpose.msra.mxu0 0.0
        %1285 = vmatprep.subr.mxu0 0.0
        %1286 = vmatpush1.xpose.msra.mxu0 0.0
        %1287 = vmatprep.subr.mxu0 0.0
        %1288 = vmatpush1.xpose.msra.mxu0 0.0
        %1289 = vmatprep.subr.mxu0 0.0
        %1290 = vmatpush1.xpose.msra.mxu0 0.0
        %1291 = vmatprep.subr.mxu0 0.0
        %1292 = vmatpush1.xpose.msra.mxu0 0.0
        %1293 = vmatprep.subr.mxu0 0.0
        %1294 = vmatpush1.xpose.msra.mxu0 0.0
        %1295 = vmatprep.subr.mxu0 0.0
        %1296 = vmatpush1.xpose.msra.mxu0 0.0
        %1297 = vmatprep.subr.mxu0 0.0
        %1298 = vmatpush1.xpose.msra.mxu0 0.0
        %1299 = vmatprep.subr.mxu0 0.0
        %1300 = vmatpush1.xpose.msra.mxu0 0.0
        %1301 = vmatprep.subr.mxu0 0.0
        %1302 = vmatpush1.xpose.msra.mxu0 0.0
        %1303 = vmatprep.mubr.f32.mxu0 %v1232
        %1304 = vmatmul.mubr.f32.gmra.mrb[0].mxu0 %v1231
        %v1305 = vpop.f32.mrb[0].mxu0
        %v1306 = vadd.f32 0.0, %v1305
        %v1307 = vpop.f32.mrb[0].mxu0
        %1308 = vmatprep.mubr.f32.mxu0 %v1234
        %1309 = vmatmul.mubr.f32.gmra.mrb[0].mxu0 %v1233
        %v1310 = vpop.f32.mrb[0].mxu0
        %v1311 = vadd.f32 0.0, %v1310
        %v1312 = vpop.f32.mrb[0].mxu0
        %1313 = vmatprep.mubr.f32.mxu0 %v1236
        %1314 = vmatmul.mubr.f32.gmra.mrb[0].mxu0 %v1235
        %v1315 = vpop.f32.mrb[0].mxu0
        %v1316 = vadd.f32 0.0, %v1315
        %v1317 = vpop.f32.mrb[0].mxu0
        %1318 = vmatprep.mubr.f32.mxu0 %v1238
        %1319 = vmatmul.mubr.f32.gmra.mrb[0].mxu0 %v1237
        %v1320 = vpop.f32.mrb[0].mxu0
        %v1321 = vadd.f32 0.0, %v1320
        %v1322 = vpop.f32.mrb[0].mxu0
        %1323 = vdwg.mxu0
        %v1324 = vld [vmem:[#allocation5] sm:$0x1]
        %s1325 = vtos %v1324
        %s1326 = smul.addr %s704, 8
        %s1327 = scalar_lea.vmem %s340, %s1326 [#allocation6]
        %v1328 = vld [vmem:[%s1327] sm:$0xff]
        %v1329 = vld [vmem:[%s1327 + $0x10] sm:$0xff]
        %v1330 = vld [vmem:[%s1327 + $0x20] sm:$0xff]
        %v1331 = vld [vmem:[%s1327 + $0x30] sm:$0xff]
        %v1332 = vstv %s1325
        %v1333 = vmul.f32 %v1332, %v1306
        %v1334 = vmul.f32 %v1332, %v1311
        %v1335 = vmul.f32 %v1332, %v1316
        %v1336 = vmul.f32 %v1332, %v1321
        %v1337 = vadd.f32 %v1333, %v1328
        %v1338 = vadd.f32 %v1334, %v1329
        %v1339 = vadd.f32 %v1335, %v1330
        %v1340 = vadd.f32 %v1336, %v1331
        %1341 = vst [vmem:[%s372] sm:$0xff] %v1337
        %1342 = vst [vmem:[%s372 + $0x8] sm:$0xff] %v1338
        %1343 = vst [vmem:[%s372 + $0x10] sm:$0xff] %v1339
        %1344 = vst [vmem:[%s372 + $0x18] sm:$0xff] %v1340
        %s1345 = sand.u32 %s227, 1
        %s1346 = scalar_lea.sflag [#allocation8], %s1345
        %s1347 = sand.u32 %s227, 1
        %s1348 = smul.addr %s1347, 32
        %s1349 = scalar_lea.vmem [#allocation9], %s1348
        %s1350 = sand.u32 %s255, 1
        %s1351 = scalar_lea.sflag [#allocation11], %s1350
        %s1352 = sand.u32 %s255, 1
        %s1353 = smul.addr %s1352, 256
        %s1354 = scalar_lea.vmem [#allocation10], %s1353
        // Predicated region
        $region61: #{tpu_custom_call.1} parent=51 // pred_check
          %p1355 = pneg %p237
        $region62: #{tpu_custom_call.1} parent=51 // pred_check_branch
          %1357 = sbr.rel (%p1355) target = $region64
        $region63: #{tpu_custom_call.1} parent=51 // pred_region
          %s1359 = ssub.s32 512, 512
          %1360 = vsyncadd %s1346, %s1359
          %s1361 = smul.addr %s36, 8
          %s1362 = sadd.s32 %s37, %s1361
          %s1363 = smul.addr %s1362, 128
          %s1364 = scalar_lea.hbm %s8, %s1363
          %s1365 = sshll.u32 %s1349, 4
          %s1366 = int_to_ptr.vmem [resolvable:$true] %s1365
          %1371 = dma.vmem_to_hbm [thread:$0]  %s1366, 512, %s1364, %s1346, 128, 256, 8
        $region64: #{tpu_custom_call.1} parent=51 // pred_fallthru
          _
        // Predicated region
        $region65: #{tpu_custom_call.1} parent=51 // pred_check
          %p1372 = pneg %p265
        $region66: #{tpu_custom_call.1} parent=51 // pred_check_branch
          %1374 = sbr.rel (%p1372) target = $region68
        $region67: #{tpu_custom_call.1} parent=51 // pred_region
          %s1375 = smul.u32 16, %s37
          %s1377 = ssub.s32 4096, 4096
          %1378 = vsyncadd %s1351, %s1377
          %s1379 = smul.addr %s1375, 2
          %s1380 = smul.addr %s36, 64
          %s1381 = sadd.s32 %s1379, %s1380
          %s1382 = smul.addr %s1381, 128
          %s1383 = scalar_lea.hbm %s9, %s1382
          %s1384 = sshll.u32 %s1354, 4
          %s1385 = int_to_ptr.vmem [resolvable:$true] %s1384
          %1390 = dma.vmem_to_hbm [thread:$0]  %s1385, 4096, %s1383, %s1351, 256, 256, 16
        $region68: #{tpu_custom_call.1} parent=51 // pred_fallthru
          _
      $region52: #{tpu_custom_call.1} parent=5 // pred_fallthru
        _
      %p1391 = scmp.le.s32.totalorder 2, %s27
      // Predicated region
      $region69: #{tpu_custom_call.1} parent=5 // pred_check
        %p1392 = pneg %p1391
      $region70: #{tpu_custom_call.1} parent=5 // pred_check_branch
        %1394 = sbr.rel (%p1392) target = $region72
      $region71: #{tpu_custom_call.1} parent=5 // pred_region
        %s1395 = ssub.s32 %s27, 2
        // Predicated region
        $region73: #{tpu_custom_call.1} parent=71 // pred_check
          %p1396 = pneg %p243
        $region74: #{tpu_custom_call.1} parent=71 // pred_check_branch
          %1398 = sbr.rel (%p1396) target = $region76
        $region75: #{tpu_custom_call.1} parent=71 // pred_region
          %s1399 = sand.u32 %s228, 1
          %s1400 = scalar_lea.sflag [#allocation8], %s1399
          %s1401 = sand.u32 %s228, 1
          %s1402 = smul.addr %s1401, 32
          %s1403 = scalar_lea.vmem [#allocation9], %s1402
          %1404 = dma.done %s1400, 512
        $region76: #{tpu_custom_call.1} parent=71 // pred_fallthru
          _
        // Predicated region
        $region77: #{tpu_custom_call.1} parent=71 // pred_check
          %p1405 = pneg %p271
        $region78: #{tpu_custom_call.1} parent=71 // pred_check_branch
          %1407 = sbr.rel (%p1405) target = $region80
        $region79: #{tpu_custom_call.1} parent=71 // pred_region
          %s1408 = sand.u32 %s256, 1
          %s1409 = scalar_lea.sflag [#allocation11], %s1408
          %s1410 = sand.u32 %s256, 1
          %s1411 = smul.addr %s1410, 256
          %s1412 = scalar_lea.vmem [#allocation10], %s1411
          %1413 = dma.done %s1409, 4096
        $region80: #{tpu_custom_call.1} parent=71 // pred_fallthru
          _
      $region72: #{tpu_custom_call.1} parent=5 // pred_fallthru
        _
    $region6: #{tpu_custom_call.1} parent=1 // loop_footer
      %s31 = sadd.s32 1, %s27
    $region7: #{tpu_custom_call.1} parent=1 // loop_footer_branch
      %26 = sbr.rel target = $region3
    $region8: #{tpu_custom_call.1} parent=1 // loop_exit
      _
    %1414 = vsyncpa [#allocation7], 1
    %s1415 = scalar_lea.sflag [#allocation7], 1
    %1416 = vsyncpa %s1415, 1
    %1417 = vsyncpa [#allocation8], 1
    %s1418 = scalar_lea.sflag [#allocation8], 1
    %1419 = vsyncpa %s1418, 1
    %1420 = vsyncpa [#allocation11], 1
    %s1421 = scalar_lea.sflag [#allocation11], 1
    %1422 = vsyncpa %s1421, 1

</llo_original>
